<compile_context>
chip_gen: v7x
topology: tpu7x:2x2x1
jax: 0.10.0
libtpu: 0.0.40
codegen_flags: <defaults>
</compile_context>

<pallas_src>
import functools

import jax
import jax.numpy as jnp
from jax.experimental import pallas as pl
from jax.experimental.pallas import tpu as pltpu


def _round_up(v, m):
    return ((v + m - 1) // m) * m


def _cdiv(a, b):
    return (a + b - 1) // b


# Conservative per-kernel VMEM working-set target (fits v7x's 32 MiB scoped
# default with headroom); vmem_limit_bytes below gives extra slack on v5e/v6e.
_VMEM_BUDGET = 28 * 1024 * 1024
_VMEM_LIMIT = 64 * 1024 * 1024


# ----------------------------------------------------------------------------
# Pallas kernel: K-tiled GEMM with f32 accumulator + constant-slope LeakyReLU
# ----------------------------------------------------------------------------
def _conv_gemm_kernel(x_ref, w_ref, o_ref, acc_ref, *, slope):
    @pl.when(pl.program_id(1) == 0)
    def _():
        acc_ref[...] = jnp.zeros_like(acc_ref)

    acc_ref[...] += jnp.dot(x_ref[...], w_ref[...],
                            preferred_element_type=jnp.float32)

    @pl.when(pl.program_id(1) == pl.num_programs(1) - 1)
    def _():
        y = acc_ref[...]
        y = jnp.where(y > 0, y, slope * y)
        o_ref[...] = y.astype(o_ref.dtype)


def conv_gemm(x, w, *, slope, out_dtype=jnp.bfloat16, tm_max=512):
    """leaky_relu(x @ w, slope).

    x: (M, K) activations (cast to w.dtype, bf16).  w: (Kp, Np) pre-padded
    lane-dense weight matrix (Kp, Np multiples of 128).  Returns (M, Np).
    """
    M, K = x.shape
    Kp, Np = w.shape
    assert Kp % 128 == 0 and Np % 128 == 0 and Kp >= K, (K, Kp, Np)
    x = x.astype(w.dtype)

    # --- K tiling: keep weights streamable for big layers -------------------
    if Kp <= 2048:
        TK = Kp
    else:
        TK = 1024
        new_kp = _round_up(Kp, TK)
        if new_kp != Kp:
            w = jnp.pad(w, ((0, new_kp - Kp), (0, 0)))
            Kp = new_kp

    # --- M tiling: balanced tiles, >= 2 steps so v7x's 2nd core gets work ---
    n_tiles = max(1, _cdiv(M, tm_max))
    if M >= 16 and n_tiles < 2:
        n_tiles = 2
    TM = _round_up(_cdiv(M, n_tiles), 16)

    # --- VMEM budget: dbl-buffered w/x/out tiles + f32 accumulator ----------
    def _usage(tm):
        return (2 * TK * Np * 2          # weight tile (bf16, double-buffered)
                + 2 * tm * TK * 2        # x tile (bf16, double-buffered)
                + 2 * tm * Np * 4        # out tile (<= f32, double-buffered)
                + tm * Np * 4)           # accumulator scratch

    while TM > 16 and _usage(TM) > _VMEM_BUDGET:
        TM = max(16, _round_up(TM // 2, 16))

    n_tiles = _cdiv(M, TM)
    Mp = n_tiles * TM

    xp = x
    if Mp != M or Kp != K:
        xp = jnp.pad(x, ((0, Mp - M), (0, Kp - K)))

    out = pl.pallas_call(
        functools.partial(_conv_gemm_kernel, slope=slope),
        out_shape=jax.ShapeDtypeStruct((Mp, Np), out_dtype),
        grid_spec=pltpu.PrefetchScalarGridSpec(
            num_scalar_prefetch=0,
            grid=(Mp // TM, Kp // TK),
            in_specs=[
                pl.BlockSpec((TM, TK), lambda i, k: (i, k)),   # streamed rows
                pl.BlockSpec((TK, Np), lambda i, k: (k, 0)),   # weight tiles
            ],
            out_specs=pl.BlockSpec((TM, Np), lambda i, k: (i, 0)),
            scratch_shapes=[pltpu.VMEM((TM, Np), jnp.float32)],
        ),
        compiler_params=pltpu.CompilerParams(
            dimension_semantics=("parallel", "arbitrary"),
            vmem_limit_bytes=_VMEM_LIMIT),
    )(xp, w)
    return out[:M]


# ----------------------------------------------------------------------------
# Pallas kernel: fused Dis head + Reg head (per-column slope) + Reg tower
# ----------------------------------------------------------------------------
def _heads_tower_kernel(x_ref, wc_ref, s_ref,
                        w1_ref, b1_ref, w2_ref, b2_ref, w3_ref, b3_ref,
                        head_ref, reg_ref):
    # Fused Dis (identity) + Reg (LeakyReLU 0.01) 4x4/s1/p0 convs as one GEMM.
    y = jnp.dot(x_ref[...], wc_ref[...], preferred_element_type=jnp.float32)
    y = jnp.where(y > 0, y, s_ref[...] * y)     # per-column slope (1.0 == identity)
    head_ref[...] = y.astype(head_ref.dtype)

    # Reg tower: Linear(500,100)+LReLU -> Linear(100,50)+LReLU -> Linear(50,1)
    # (weights padded so the dis column / padded columns contribute nothing).
    h = jnp.dot(y, w1_ref[...], preferred_element_type=jnp.float32) + b1_ref[...]
    h = jnp.where(h > 0, h, 0.01 * h)
    h = jnp.dot(h, w2_ref[...], preferred_element_type=jnp.float32) + b2_ref[...]
    h = jnp.where(h > 0, h, 0.01 * h)
    h = jnp.dot(h, w3_ref[...], preferred_element_type=jnp.float32) + b3_ref[...]
    reg_ref[...] = h.astype(reg_ref.dtype)


def heads_and_tower(feat_flat, hp, *, n_reg):
    """feat_flat: (B, 16*cndf).  Returns (dis (B,), reg (B,))."""
    B, K = feat_flat.shape
    Kp, Nh = hp["w_cat"].shape
    Nt = hp["w3"].shape[1]
    Bp = _round_up(B, 8)
    x = feat_flat.astype(hp["w_cat"].dtype)
    if Bp != B or Kp != K:
        x = jnp.pad(x, ((0, Bp - B), (0, Kp - K)))

    vmem = pl.BlockSpec(memory_space=pltpu.MemorySpace.VMEM)
    head, reg = pl.pallas_call(
        _heads_tower_kernel,
        out_shape=(jax.ShapeDtypeStruct((Bp, Nh), jnp.float32),
                   jax.ShapeDtypeStruct((Bp, Nt), jnp.float32)),
        in_specs=[vmem] * 9,
        out_specs=(vmem, vmem),
        compiler_params=pltpu.CompilerParams(vmem_limit_bytes=_VMEM_LIMIT),
    )(x, hp["w_cat"], hp["slope"], hp["w1"], hp["b1"],
      hp["w2"], hp["b2"], hp["w3"], hp["b3"])
    return head[:B, n_reg], reg[:B, 0]


# ----------------------------------------------------------------------------
# im2col (kept in XLA for now; see TODO at top) and conv layer wrapper
# ----------------------------------------------------------------------------
def _im2col(x_nhwc, k, stride, pad):
    B, H, W, C = x_nhwc.shape
    if pad > 0:
        x_nhwc = jnp.pad(x_nhwc, ((0, 0), (pad, pad), (pad, pad), (0, 0)))
    Ho = (H + 2 * pad - k) // stride + 1
    Wo = (W + 2 * pad - k) // stride + 1
    cols = []
    for i in range(k):
        for j in range(k):
            cols.append(
                x_nhwc[:, i:i + stride * Ho:stride, j:j + stride * Wo:stride, :])
    patches = jnp.stack(cols, axis=3)                 # (B, Ho, Wo, k*k, C)
    return patches.reshape(B * Ho * Wo, k * k * C), (B, Ho, Wo)


def conv2d_prepared(x_nhwc, w_mat, meta):
    """Conv2d (bias=False) + LeakyReLU via im2col + tiled bf16 Pallas GEMM."""
    patches, (B, Ho, Wo) = _im2col(x_nhwc, meta["k"], meta["stride"], meta["pad"])
    Kp = w_mat.shape[0]
    if patches.shape[1] != Kp:
        patches = jnp.pad(patches, ((0, 0), (0, Kp - patches.shape[1])))
    y = conv_gemm(patches, w_mat, slope=meta["slope"], out_dtype=jnp.bfloat16)
    return y[:, :meta["cout"]].reshape(B, Ho, Wo, meta["cout"])


# ----------------------------------------------------------------------------
# Parameter construction (mirrors Discriminator.__init__ shapes)
# ----------------------------------------------------------------------------
def init_discriminator_params(key, imsize, nc, ndf, n_extra_layers=0):
    assert imsize % 16 == 0, "size has to be multiple of 16"
    keys = iter(jax.random.split(key, 64))

    def rnd(shape):
        return 0.02 * jax.random.normal(next(keys), shape, jnp.float32)

    params = {}
    params["initial"] = rnd((ndf, nc, 4, 4))               # Conv2d(nc, ndf, 4, 2, 1)
    csize, cndf = imsize // 2, ndf

    params["extra"] = []
    for _ in range(n_extra_layers):
        params["extra"].append(rnd((cndf, cndf, 3, 3)))     # Conv2d(cndf, cndf, 3, 1, 1)

    params["pyramid"] = []
    while csize > 4:
        params["pyramid"].append(rnd((cndf * 2, cndf, 4, 4)))  # Conv2d(cndf, 2cndf, 4, 2, 1)
        cndf *= 2
        csize //= 2

    params["dis_w"] = rnd((1, cndf, 4, 4))                  # Conv2d(cndf, 1, 4, 1, 0)
    params["reg_conv"] = rnd((500, cndf, 4, 4))             # Conv2d(cndf, 500, 4, 1, 0)
    # Linear weights stored pre-transposed as (in_features, out_features)
    params["lin1_w"] = rnd((500, 100))                      # Linear(500, 100)
    params["lin1_b"] = rnd((100,))
    params["lin2_w"] = rnd((100, 50))                       # Linear(100, 50)
    params["lin2_b"] = rnd((50,))
    params["lin3_w"] = rnd((50, 1))                         # Linear(50, 1)
    params["lin3_b"] = rnd((1,))
    return params


def prepare_discriminator_params(params):
    """One-time (outside the forward pass) weight preprocessing:
    transpose conv weights to (kH*kW*Cin, Cout) GEMM layout, pad K/N
    lane-dense (128), cast GEMM operands to bf16, and concatenate the Dis/Reg
    head weights + per-column slope row.  Returns (array pytree, static meta).
    """
    def conv_mat(w_oikk):
        Cout, Cin, kH, kW = w_oikk.shape
        K = kH * kW * Cin
        m = jnp.transpose(w_oikk, (2, 3, 1, 0)).reshape(K, Cout)
        Kp, Np = _round_up(K, 128), _round_up(Cout, 128)
        return jnp.pad(m, ((0, Kp - K), (0, Np - Cout))).astype(jnp.bfloat16)

    convs, conv_meta = [], []

    def add_conv(w, stride, pad, slope):
        Cout, Cin, kH, kW = w.shape
        convs.append(conv_mat(w))
        conv_meta.append(dict(k=kH, stride=stride, pad=pad,
                              cin=Cin, cout=Cout, slope=slope))

    add_conv(params["initial"], 2, 1, 0.2)
    for w in params["extra"]:
        add_conv(w, 1, 1, 0.2)
    for w in params["pyramid"]:
        add_conv(w, 2, 1, 0.2)

    # Fused Dis (identity) + Reg (LeakyReLU 0.01) head GEMM, lane-dense.
    dis_w, reg_w = params["dis_w"], params["reg_conv"]
    _, Cf, kH, kW = dis_w.shape
    K = kH * kW * Cf
    w_reg = jnp.transpose(reg_w, (2, 3, 1, 0)).reshape(K, -1)   # (K, 500)
    w_dis = jnp.transpose(dis_w, (2, 3, 1, 0)).reshape(K, -1)   # (K, 1)
    n_reg = w_reg.shape[1]
    w_cat = jnp.concatenate([w_reg, w_dis], axis=1)             # (K, 501)
    Kp, Np = _round_up(K, 128), _round_up(w_cat.shape[1], 128)
    w_cat = jnp.pad(w_cat, ((0, Kp - K), (0, Np - w_cat.shape[1]))).astype(jnp.bfloat16)
    slope = jnp.concatenate(
        [jnp.full((n_reg,), 0.01, jnp.float32),
         jnp.ones((Np - n_reg,), jnp.float32)]).reshape(1, Np)

    # Reg tower Linears (kept f32: tiny, exact).  Zero K/N padding is exact
    # because leaky(0 + 0) == 0 and the dis column hits all-zero w1 rows.
    def lin(w, b, ki_pad):
        Ki, No = w.shape
        Nop = _round_up(No, 128)
        wp = jnp.pad(w.astype(jnp.float32), ((0, ki_pad - Ki), (0, Nop - No)))
        bp = jnp.pad(b.astype(jnp.float32), (0, Nop - No)).reshape(1, Nop)
        return wp, bp

    w1, b1 = lin(params["lin1_w"], params["lin1_b"], Np)
    w2, b2 = lin(params["lin2_w"], params["lin2_b"], w1.shape[1])
    w3, b3 = lin(params["lin3_w"], params["lin3_b"], w2.shape[1])

    prep = dict(convs=convs,
                heads=dict(w_cat=w_cat, slope=slope,
                           w1=w1, b1=b1, w2=w2, b2=b2, w3=w3, b3=b3))
    meta = dict(conv_meta=tuple(conv_meta), n_reg=int(n_reg))
    return prep, meta


# ----------------------------------------------------------------------------
# Forward pass (matches PyTorch Discriminator.forward semantics)
# ----------------------------------------------------------------------------
def discriminator_forward(prep, x_nchw, *, meta):
    B = x_nchw.shape[0]
    x = jnp.transpose(x_nchw, (0, 2, 3, 1)).astype(jnp.bfloat16)   # NCHW->NHWC

    # features: initial / extra / pyramid convs, each one fused GEMM+LeakyReLU
    for w_mat, m in zip(prep["convs"], meta["conv_meta"]):
        x = conv2d_prepared(x, w_mat, m)
    # x: (B, 4, 4, cndf)

    feat = x.reshape(B, -1)        # (h, w, c) ordering == im2col (kh, kw, cin)
    dis_val, reg_val = heads_and_tower(feat, prep["heads"], n_reg=meta["n_reg"])
    return dis_val, reg_val


# ----------------------------------------------------------------------------
# Pure-JAX f32 reference (no Pallas) for correctness checking
# ----------------------------------------------------------------------------
def _reference_forward(params, x_nchw):
    hi = jax.lax.Precision.HIGHEST

    def leaky(v, s):
        return jnp.where(v > 0, v, s * v)

    def conv(xn, w, stride, pad):
        Cout, Cin, kH, kW = w.shape
        patches, (B, Ho, Wo) = _im2col(xn, kH, stride, pad)
        wm = jnp.transpose(w, (2, 3, 1, 0)).reshape(kH * kW * Cin, Cout)
        return jnp.dot(patches, wm, precision=hi).reshape(B, Ho, Wo, Cout)

    x = jnp.transpose(x_nchw, (0, 2, 3, 1))
    x = leaky(conv(x, params["initial"], 2, 1), 0.2)
    for w in params["extra"]:
        x = leaky(conv(x, w, 1, 1), 0.2)
    for w in params["pyramid"]:
        x = leaky(conv(x, w, 2, 1), 0.2)
    B = x.shape[0]
    dis = conv(x, params["dis_w"], 1, 0).reshape(B)
    r = leaky(conv(x, params["reg_conv"], 1, 0).reshape(B, -1), 0.01)
    r = leaky(jnp.dot(r, params["lin1_w"], precision=hi) + params["lin1_b"], 0.01)
    r = leaky(jnp.dot(r, params["lin2_w"], precision=hi) + params["lin2_b"], 0.01)
    reg = (jnp.dot(r, params["lin3_w"], precision=hi) + params["lin3_b"]).reshape(B)
    return dis, reg


# ----------------------------------------------------------------------------
if __name__ == "__main__":
    imsize, nz, nc, ndf = 16, 10, 4, 8
    batch = 2

    key = jax.random.PRNGKey(0)
    k_params, k_input = jax.random.split(key)

    params = init_discriminator_params(k_params, imsize, nc, ndf, n_extra_layers=0)
    prep, meta = prepare_discriminator_params(params)     # one-time preprocessing
    x = jax.random.normal(k_input, (batch, nc, imsize, imsize), jnp.float32)

    fwd = jax.jit(functools.partial(discriminator_forward, meta=meta))
    dis_val, reg_val = fwd(prep, x)
    jax.block_until_ready((dis_val, reg_val))

    assert dis_val.shape == (batch,), dis_val.shape
    assert reg_val.shape == (batch,), reg_val.shape
    assert bool(jnp.all(jnp.isfinite(dis_val))) and bool(jnp.all(jnp.isfinite(reg_val)))

    # Correctness vs. plain-JAX f32 reference.  Tolerances account for bf16
    # GEMM operands (f32 accumulation) on the conv/head path.
    dis_ref, reg_ref = _reference_forward(params, x)
    assert jnp.allclose(dis_val, dis_ref, atol=3e-3, rtol=5e-2), (dis_val, dis_ref)
    assert jnp.allclose(reg_val, reg_ref, atol=3e-3, rtol=5e-2), (reg_val, reg_ref)

    print("KERNEL_OK")
</pallas_src>

<mosaic_0001>
module attributes {stable_mosaic.version = 11 : i64} {
  func.func @_conv_gemm_kernel(%arg0: i32, %arg1: i32, %arg2: memref<64x128xbf16, #tpu.memory_space<vmem>>, %arg3: memref<128x128xbf16, #tpu.memory_space<vmem>>, %arg4: memref<64x128xbf16, #tpu.memory_space<vmem>>, %arg5: memref<64x128xf32, #tpu.memory_space<vmem>>) attributes {dimension_semantics = [#tpu.dimension_semantics<parallel>, #tpu.dimension_semantics<arbitrary>], iteration_bounds = array<i64: 2, 1>, scalar_prefetch = 0 : i64, scratch_operands = 1 : i64, tpu.core_type = #tpu.core_type<tc>, window_params = [{transform_indices = @transform_0, window_bounds = array<i64: 64, 128>}, {transform_indices = @transform_1, window_bounds = array<i64: 128, 128>}, {transform_indices = @transform_2, window_bounds = array<i64: 64, 128>}]} {
    %c0_i32 = arith.constant 0 : i32
    %0 = arith.cmpi eq, %arg1, %c0_i32 : i32
    %1 = arith.extui %0 : i1 to i32
    %c0_i32_0 = arith.constant 0 : i32
    %2 = arith.cmpi ne, %1, %c0_i32_0 : i32
    scf.if %2 {
      %cst_10 = arith.constant 0.000000e+00 : f32
      %12 = vector.broadcast %cst_10 : f32 to vector<64x128xf32>
      %c0_11 = arith.constant 0 : index
      %c0_12 = arith.constant 0 : index
      %13 = vector.load %arg5[%c0_11, %c0_12] : memref<64x128xf32, #tpu.memory_space<vmem>>, vector<64x128xf32>
      tpu.vector_store %arg5[%c0_11, %c0_12], %12 {strides = array<i32>} : memref<64x128xf32, #tpu.memory_space<vmem>>, vector<64x128xf32>,
    } else {
    }
    %c0 = arith.constant 0 : index
    %c0_1 = arith.constant 0 : index
    %3 = vector.load %arg5[%c0, %c0_1] : memref<64x128xf32, #tpu.memory_space<vmem>>, vector<64x128xf32>
    %c0_2 = arith.constant 0 : index
    %c0_3 = arith.constant 0 : index
    %4 = vector.load %arg2[%c0_2, %c0_3] : memref<64x128xbf16, #tpu.memory_space<vmem>>, vector<64x128xbf16>
    %c0_4 = arith.constant 0 : index
    %c0_5 = arith.constant 0 : index
    %5 = vector.load %arg3[%c0_4, %c0_5] : memref<128x128xbf16, #tpu.memory_space<vmem>>, vector<128x128xbf16>
    %cst = arith.constant dense<0.000000e+00> : vector<64x128xf32>
    %6 = tpu.matmul %4, %5, %cst {dimension_numbers = #tpu.dot_dimension_numbers<[1], [0], [0], [1], [0, 0, 1, 1], [], []>} : vector<64x128xbf16>, vector<128x128xbf16>, vector<64x128xf32> -> vector<64x128xf32>
    %7 = arith.addf %3, %6 : vector<64x128xf32>
    %c0_6 = arith.constant 0 : index
    %c0_7 = arith.constant 0 : index
    %8 = vector.load %arg5[%c0_6, %c0_7] : memref<64x128xf32, #tpu.memory_space<vmem>>, vector<64x128xf32>
    tpu.vector_store %arg5[%c0_6, %c0_7], %7 {strides = array<i32>} : memref<64x128xf32, #tpu.memory_space<vmem>>, vector<64x128xf32>,
    %c0_i32_8 = arith.constant 0 : i32
    %9 = arith.cmpi eq, %arg1, %c0_i32_8 : i32
    %10 = arith.extui %9 : i1 to i32
    %c0_i32_9 = arith.constant 0 : i32
    %11 = arith.cmpi ne, %10, %c0_i32_9 : i32
    scf.if %11 {
      %c0_10 = arith.constant 0 : index
      %c0_11 = arith.constant 0 : index
      %12 = vector.load %arg5[%c0_10, %c0_11] : memref<64x128xf32, #tpu.memory_space<vmem>>, vector<64x128xf32>
      %cst_12 = arith.constant 0.000000e+00 : f32
      %13 = vector.broadcast %cst_12 : f32 to vector<64x128xf32>
      %14 = arith.cmpf ogt, %12, %13 : vector<64x128xf32>
      %cst_13 = arith.constant 2.000000e-01 : f32
      %15 = vector.broadcast %cst_13 : f32 to vector<64x128xf32>
      %16 = arith.mulf %15, %12 : vector<64x128xf32>
      %17 = arith.select %14, %12, %16 : vector<64x128xi1>, vector<64x128xf32>
      %18 = arith.truncf %17 : vector<64x128xf32> to vector<64x128xbf16>
      %c0_14 = arith.constant 0 : index
      %c0_15 = arith.constant 0 : index
      %19 = vector.load %arg4[%c0_14, %c0_15] : memref<64x128xbf16, #tpu.memory_space<vmem>>, vector<64x128xbf16>
      tpu.vector_store %arg4[%c0_14, %c0_15], %18 {strides = array<i32>} : memref<64x128xbf16, #tpu.memory_space<vmem>>, vector<64x128xbf16>,
    } else {
    }
    return
  }
  func.func @transform_0(%arg0: i32, %arg1: i32) -> (i32, i32) {
    %c0_i32 = arith.constant 0 : i32
    return %arg0, %arg1 : i32, i32
  }
  func.func @transform_1(%arg0: i32, %arg1: i32) -> (i32, i32) {
    %c0_i32 = arith.constant 0 : i32
    %c0_i32_0 = arith.constant 0 : i32
    return %arg1, %c0_i32 : i32, i32
  }
  func.func @transform_2(%arg0: i32, %arg1: i32) -> (i32, i32) {
    %c0_i32 = arith.constant 0 : i32
    %c0_i32_0 = arith.constant 0 : i32
    return %arg0, %c0_i32 : i32, i32
  }
}

module attributes {stable_mosaic.version = 11 : i64} {
  func.func @_conv_gemm_kernel(%arg0: i32, %arg1: i32, %arg2: memref<16x128xbf16, #tpu.memory_space<vmem>>, %arg3: memref<128x128xbf16, #tpu.memory_space<vmem>>, %arg4: memref<16x128xbf16, #tpu.memory_space<vmem>>, %arg5: memref<16x128xf32, #tpu.memory_space<vmem>>) attributes {dimension_semantics = [#tpu.dimension_semantics<parallel>, #tpu.dimension_semantics<arbitrary>], iteration_bounds = array<i64: 2, 1>, scalar_prefetch = 0 : i64, scratch_operands = 1 : i64, tpu.core_type = #tpu.core_type<tc>, window_params = [{transform_indices = @transform_0, window_bounds = array<i64: 16, 128>}, {transform_indices = @transform_1, window_bounds = array<i64: 128, 128>}, {transform_indices = @transform_2, window_bounds = array<i64: 16, 128>}]} {
    %c0_i32 = arith.constant 0 : i32
    %0 = arith.cmpi eq, %arg1, %c0_i32 : i32
    %1 = arith.extui %0 : i1 to i32
    %c0_i32_0 = arith.constant 0 : i32
    %2 = arith.cmpi ne, %1, %c0_i32_0 : i32
    scf.if %2 {
      %cst_10 = arith.constant 0.000000e+00 : f32
      %12 = vector.broadcast %cst_10 : f32 to vector<16x128xf32>
      %c0_11 = arith.constant 0 : index
      %c0_12 = arith.constant 0 : index
      %13 = vector.load %arg5[%c0_11, %c0_12] : memref<16x128xf32, #tpu.memory_space<vmem>>, vector<16x128xf32>
      tpu.vector_store %arg5[%c0_11, %c0_12], %12 {strides = array<i32>} : memref<16x128xf32, #tpu.memory_space<vmem>>, vector<16x128xf32>,
    } else {
    }
    %c0 = arith.constant 0 : index
    %c0_1 = arith.constant 0 : index
    %3 = vector.load %arg5[%c0, %c0_1] : memref<16x128xf32, #tpu.memory_space<vmem>>, vector<16x128xf32>
    %c0_2 = arith.constant 0 : index
    %c0_3 = arith.constant 0 : index
    %4 = vector.load %arg2[%c0_2, %c0_3] : memref<16x128xbf16, #tpu.memory_space<vmem>>, vector<16x128xbf16>
    %c0_4 = arith.constant 0 : index
    %c0_5 = arith.constant 0 : index
    %5 = vector.load %arg3[%c0_4, %c0_5] : memref<128x128xbf16, #tpu.memory_space<vmem>>, vector<128x128xbf16>
    %cst = arith.constant dense<0.000000e+00> : vector<16x128xf32>
    %6 = tpu.matmul %4, %5, %cst {dimension_numbers = #tpu.dot_dimension_numbers<[1], [0], [0], [1], [0, 0, 1, 1], [], []>} : vector<16x128xbf16>, vector<128x128xbf16>, vector<16x128xf32> -> vector<16x128xf32>
    %7 = arith.addf %3, %6 : vector<16x128xf32>
    %c0_6 = arith.constant 0 : index
    %c0_7 = arith.constant 0 : index
    %8 = vector.load %arg5[%c0_6, %c0_7] : memref<16x128xf32, #tpu.memory_space<vmem>>, vector<16x128xf32>
    tpu.vector_store %arg5[%c0_6, %c0_7], %7 {strides = array<i32>} : memref<16x128xf32, #tpu.memory_space<vmem>>, vector<16x128xf32>,
    %c0_i32_8 = arith.constant 0 : i32
    %9 = arith.cmpi eq, %arg1, %c0_i32_8 : i32
    %10 = arith.extui %9 : i1 to i32
    %c0_i32_9 = arith.constant 0 : i32
    %11 = arith.cmpi ne, %10, %c0_i32_9 : i32
    scf.if %11 {
      %c0_10 = arith.constant 0 : index
      %c0_11 = arith.constant 0 : index
      %12 = vector.load %arg5[%c0_10, %c0_11] : memref<16x128xf32, #tpu.memory_space<vmem>>, vector<16x128xf32>
      %cst_12 = arith.constant 0.000000e+00 : f32
      %13 = vector.broadcast %cst_12 : f32 to vector<16x128xf32>
      %14 = arith.cmpf ogt, %12, %13 : vector<16x128xf32>
      %cst_13 = arith.constant 2.000000e-01 : f32
      %15 = vector.broadcast %cst_13 : f32 to vector<16x128xf32>
      %16 = arith.mulf %15, %12 : vector<16x128xf32>
      %17 = arith.select %14, %12, %16 : vector<16x128xi1>, vector<16x128xf32>
      %18 = arith.truncf %17 : vector<16x128xf32> to vector<16x128xbf16>
      %c0_14 = arith.constant 0 : index
      %c0_15 = arith.constant 0 : index
      %19 = vector.load %arg4[%c0_14, %c0_15] : memref<16x128xbf16, #tpu.memory_space<vmem>>, vector<16x128xbf16>
      tpu.vector_store %arg4[%c0_14, %c0_15], %18 {strides = array<i32>} : memref<16x128xbf16, #tpu.memory_space<vmem>>, vector<16x128xbf16>,
    } else {
    }
    return
  }
  func.func @transform_0(%arg0: i32, %arg1: i32) -> (i32, i32) {
    %c0_i32 = arith.constant 0 : i32
    return %arg0, %arg1 : i32, i32
  }
  func.func @transform_1(%arg0: i32, %arg1: i32) -> (i32, i32) {
    %c0_i32 = arith.constant 0 : i32
    %c0_i32_0 = arith.constant 0 : i32
    return %arg1, %c0_i32 : i32, i32
  }
  func.func @transform_2(%arg0: i32, %arg1: i32) -> (i32, i32) {
    %c0_i32 = arith.constant 0 : i32
    %c0_i32_0 = arith.constant 0 : i32
    return %arg0, %c0_i32 : i32, i32
  }
}

module attributes {stable_mosaic.version = 11 : i64} {
  func.func @_heads_tower_kernel(%arg0: memref<8x256xbf16, #tpu.memory_space<vmem>>, %arg1: memref<256x512xbf16, #tpu.memory_space<vmem>>, %arg2: memref<1x512xf32, #tpu.memory_space<vmem>>, %arg3: memref<512x128xf32, #tpu.memory_space<vmem>>, %arg4: memref<1x128xf32, #tpu.memory_space<vmem>>, %arg5: memref<128x128xf32, #tpu.memory_space<vmem>>, %arg6: memref<1x128xf32, #tpu.memory_space<vmem>>, %arg7: memref<128x128xf32, #tpu.memory_space<vmem>>, %arg8: memref<1x128xf32, #tpu.memory_space<vmem>>, %arg9: memref<8x512xf32, #tpu.memory_space<vmem>>, %arg10: memref<8x128xf32, #tpu.memory_space<vmem>>) attributes {dimension_semantics = [], scalar_prefetch = 0 : i64, scratch_operands = 0 : i64, tpu.core_type = #tpu.core_type<tc>} {
    %c0 = arith.constant 0 : index
    %c0_0 = arith.constant 0 : index
    %0 = vector.load %arg0[%c0, %c0_0] : memref<8x256xbf16, #tpu.memory_space<vmem>>, vector<8x256xbf16>
    %c0_1 = arith.constant 0 : index
    %c0_2 = arith.constant 0 : index
    %1 = vector.load %arg1[%c0_1, %c0_2] : memref<256x512xbf16, #tpu.memory_space<vmem>>, vector<256x512xbf16>
    %cst = arith.constant dense<0.000000e+00> : vector<8x512xf32>
    %2 = tpu.matmul %0, %1, %cst {dimension_numbers = #tpu.dot_dimension_numbers<[1], [0], [0], [1], [0, 0, 1, 1], [], []>} : vector<8x256xbf16>, vector<256x512xbf16>, vector<8x512xf32> -> vector<8x512xf32>
    %cst_3 = arith.constant 0.000000e+00 : f32
    %3 = vector.broadcast %cst_3 : f32 to vector<8x512xf32>
    %4 = arith.cmpf ogt, %2, %3 : vector<8x512xf32>
    %c0_4 = arith.constant 0 : index
    %c0_5 = arith.constant 0 : index
    %5 = vector.load %arg2[%c0_4, %c0_5] : memref<1x512xf32, #tpu.memory_space<vmem>>, vector<1x512xf32>
    %6 = vector.broadcast %5 : vector<1x512xf32> to vector<8x512xf32>
    %7 = arith.mulf %6, %2 : vector<8x512xf32>
    %8 = arith.select %4, %2, %7 : vector<8x512xi1>, vector<8x512xf32>
    %c0_6 = arith.constant 0 : index
    %c0_7 = arith.constant 0 : index
    %9 = vector.load %arg9[%c0_6, %c0_7] : memref<8x512xf32, #tpu.memory_space<vmem>>, vector<8x512xf32>
    tpu.vector_store %arg9[%c0_6, %c0_7], %8 {strides = array<i32>} : memref<8x512xf32, #tpu.memory_space<vmem>>, vector<8x512xf32>,
    %c0_8 = arith.constant 0 : index
    %c0_9 = arith.constant 0 : index
    %10 = vector.load %arg3[%c0_8, %c0_9] : memref<512x128xf32, #tpu.memory_space<vmem>>, vector<512x128xf32>
    %cst_10 = arith.constant dense<0.000000e+00> : vector<8x128xf32>
    %11 = tpu.matmul %8, %10, %cst_10 {dimension_numbers = #tpu.dot_dimension_numbers<[1], [0], [0], [1], [0, 0, 1, 1], [], []>} : vector<8x512xf32>, vector<512x128xf32>, vector<8x128xf32> -> vector<8x128xf32>
    %c0_11 = arith.constant 0 : index
    %c0_12 = arith.constant 0 : index
    %12 = vector.load %arg4[%c0_11, %c0_12] : memref<1x128xf32, #tpu.memory_space<vmem>>, vector<1x128xf32>
    %13 = vector.broadcast %12 : vector<1x128xf32> to vector<8x128xf32>
    %14 = arith.addf %11, %13 : vector<8x128xf32>
    %cst_13 = arith.constant 0.000000e+00 : f32
    %15 = vector.broadcast %cst_13 : f32 to vector<8x128xf32>
    %16 = arith.cmpf ogt, %14, %15 : vector<8x128xf32>
    %cst_14 = arith.constant 0.00999999977 : f32
    %17 = vector.broadcast %cst_14 : f32 to vector<8x128xf32>
    %18 = arith.mulf %17, %14 : vector<8x128xf32>
    %19 = arith.select %16, %14, %18 : vector<8x128xi1>, vector<8x128xf32>
    %c0_15 = arith.constant 0 : index
    %c0_16 = arith.constant 0 : index
    %20 = vector.load %arg5[%c0_15, %c0_16] : memref<128x128xf32, #tpu.memory_space<vmem>>, vector<128x128xf32>
    %cst_17 = arith.constant dense<0.000000e+00> : vector<8x128xf32>
    %21 = tpu.matmul %19, %20, %cst_17 {dimension_numbers = #tpu.dot_dimension_numbers<[1], [0], [0], [1], [0, 0, 1, 1], [], []>} : vector<8x128xf32>, vector<128x128xf32>, vector<8x128xf32> -> vector<8x128xf32>
    %c0_18 = arith.constant 0 : index
    %c0_19 = arith.constant 0 : index
    %22 = vector.load %arg6[%c0_18, %c0_19] : memref<1x128xf32, #tpu.memory_space<vmem>>, vector<1x128xf32>
    %23 = vector.broadcast %22 : vector<1x128xf32> to vector<8x128xf32>
    %24 = arith.addf %21, %23 : vector<8x128xf32>
    %cst_20 = arith.constant 0.000000e+00 : f32
    %25 = vector.broadcast %cst_20 : f32 to vector<8x128xf32>
    %26 = arith.cmpf ogt, %24, %25 : vector<8x128xf32>
    %cst_21 = arith.constant 0.00999999977 : f32
    %27 = vector.broadcast %cst_21 : f32 to vector<8x128xf32>
    %28 = arith.mulf %27, %24 : vector<8x128xf32>
    %29 = arith.select %26, %24, %28 : vector<8x128xi1>, vector<8x128xf32>
    %c0_22 = arith.constant 0 : index
    %c0_23 = arith.constant 0 : index
    %30 = vector.load %arg7[%c0_22, %c0_23] : memref<128x128xf32, #tpu.memory_space<vmem>>, vector<128x128xf32>
    %cst_24 = arith.constant dense<0.000000e+00> : vector<8x128xf32>
    %31 = tpu.matmul %29, %30, %cst_24 {dimension_numbers = #tpu.dot_dimension_numbers<[1], [0], [0], [1], [0, 0, 1, 1], [], []>} : vector<8x128xf32>, vector<128x128xf32>, vector<8x128xf32> -> vector<8x128xf32>
    %c0_25 = arith.constant 0 : index
    %c0_26 = arith.constant 0 : index
    %32 = vector.load %arg8[%c0_25, %c0_26] : memref<1x128xf32, #tpu.memory_space<vmem>>, vector<1x128xf32>
    %33 = vector.broadcast %32 : vector<1x128xf32> to vector<8x128xf32>
    %34 = arith.addf %31, %33 : vector<8x128xf32>
    %c0_27 = arith.constant 0 : index
    %c0_28 = arith.constant 0 : index
    %35 = vector.load %arg10[%c0_27, %c0_28] : memref<8x128xf32, #tpu.memory_space<vmem>>, vector<8x128xf32>
    tpu.vector_store %arg10[%c0_27, %c0_28], %34 {strides = array<i32>} : memref<8x128xf32, #tpu.memory_space<vmem>>, vector<8x128xf32>,
    return
  }
}

</mosaic_0001>

<llo_original>
// kernel: discriminator_forward.3
$region0: #{discriminator_forward.3}
  #allocation0 [shape = 'u32[]', space=smem, size = 0x4, offset = 0x4, fixed_abs, tag = 'smem constant byte address 0x4 - core index']
  #allocation1 [shape = 'u32[144,128]{1,0:T(1,128)}', space=vmem, size = 0x12000, scoped, tag = 'internal scratch']
  #allocation2 [shape = 'f32[64,128]{1,0:T(8,128)}', space=vmem, size = 0x8000, scoped, tag = 'scratch operand']
  %s0 = inlined_call_operand.hbm [shape: bf16[128,128], index: 0, kind: input, shape index: {}]
  %s1 = inlined_call_operand.hbm [shape: bf16[128,128], index: 1, kind: input, shape index: {}]
  %s2 = inlined_call_operand.hbm [shape: bf16[128,128], index: 2, kind: output, shape index: {}]
  %s3 = sld [smem:[#allocation0]]
  $region57: #{discriminator_forward.3} parent=0
    _
  %s5 = ssub.s32 1, %s3
  %s6 = scalar_select 0, %s5, %s3
  $region1: #{discriminator_forward.3} parent=0
    #allocation3 [shape = 'u8[32768]{0}', space=vmem, size = 0x8000, scoped, tag = 'input window, operand 0']
    #allocation4 [shape = 's32[2]{0}', space=sflag, size = 0x8, scoped, tag = 'scoped memory for discriminator_forward.3']
    #allocation5 [shape = 's32[2]{0}', space=sflag, size = 0x8, scoped, tag = 'scoped memory for discriminator_forward.3']
    #allocation6 [shape = 'u8[32768]{0}', space=vmem, size = 0x8000, scoped, tag = 'input window, operand 1, single buffered']
    #allocation7 [shape = 's32[1]{0}', space=sflag, size = 0x4, scoped, tag = 'scoped memory for discriminator_forward.3']
    #allocation8 [shape = 'u8[32768]{0}', space=vmem, size = 0x8000, scoped, tag = 'output window, operand 0']
    %7 = vsyncpa [#allocation4], 0
    %s8 = scalar_lea.sflag [#allocation4], 1
    %9 = vsyncpa %s8, 0
    %10 = vsyncpa [#allocation7], 0
    %11 = vsyncpa [#allocation5], 0
    %s12 = scalar_lea.sflag [#allocation5], 1
    %13 = vsyncpa %s12, 0
    loop: start=0, step=1, limit=4
    $region2: #{discriminator_forward.3} parent=1 // loop_pre_header
      _
    $region3: #{discriminator_forward.3} parent=1 // loop_header
      %s15 = sphi 0, %s19
      %p16 = scmp.ge.s32.totalorder %s15, 4
      %s22 = sphi 0, %s34
      %s23 = sphi 0, %s30
      %s24 = sphi 0, %s22
      %s25 = sphi 0, %s23
      %s26 = sphi 0, %s24
      %s27 = sphi 0, %s25
      %s39 = sphi 0, %s41
      %s42 = sphi 0, %s39
      %s43 = sphi 0, %s42
      %s59 = sphi 0, %s43
      %s65 = sphi 0, %s67
      %s68 = sphi 0, %s65
      %s69 = sphi 0, %s68
      %s85 = sphi 0, %s69
      %s91 = sphi 0, %s93
      %s94 = sphi 0, %s91
      %s95 = sphi 0, %s94
      %s111 = sphi 0, %s95
    $region4: #{discriminator_forward.3} parent=1 // loop_header_branch
      %18 = sbr.rel (%p16) target = $region8
    $region5: #{discriminator_forward.3} parent=1 // loop_body
      %s20 = ssub.s32 %s15, 1
      %s21 = ssub.s32 %s15, 2
      %s28 = sadd.s32 1, %s23
      %p29 = scmp.ge.s32.totalorder %s28, 1
      %s30 = scalar_select %p29, 0, %s28
      %s31 = sadd.s32 1, %s22
      %s32 = scalar_select %p29, %s31, %s22
      %p33 = scmp.ge.s32.totalorder %s32, 2
      %s34 = scalar_select %p33, 0, %s32
      %s35 = ssub.s32 %s22, %s34
      %s36 = ssub.s32 %s23, %s30
      %s37 = sor.u32 %s35, %s36
      %p38 = scmp.eq.s32.totalorder %s37, 0
      %s40 = sadd.s32 %s39, 1
      %s41 = scalar_select %p38, %s39, %s40
      %p44 = pneg %p38
      %p45 = scmp.eq.s32.totalorder %s15, 1
      %p46 = por %p44, %p45
      %p47 = scmp.ne.s32.totalorder %s39, %s42
      %p48 = scmp.eq.s32.totalorder %s15, 0
      %p49 = por %p47, %p48
      %p50 = scmp.ne.s32.totalorder %s39, %s42
      %p51 = scmp.eq.s32.totalorder %s20, 1
      %p52 = por %p50, %p51
      %p53 = scmp.ne.s32.totalorder %s42, %s43
      %p54 = scmp.eq.s32.totalorder %s20, 0
      %p55 = por %p53, %p54
      %p56 = scmp.ne.s32.totalorder %s42, %s43
      %p57 = scmp.eq.s32.totalorder %s21, 1
      %p58 = por %p56, %p57
      %p60 = scmp.ne.s32.totalorder %s43, %s59
      %p61 = scmp.eq.s32.totalorder %s21, 0
      %p62 = por %p60, %p61
      %s63 = ssub.s32 %s23, %s30
      %p64 = scmp.eq.s32.totalorder %s63, 0
      %s66 = sadd.s32 %s65, 1
      %s67 = scalar_select %p64, %s65, %s66
      %p70 = pneg %p64
      %p71 = scmp.eq.s32.totalorder %s15, 1
      %p72 = por %p70, %p71
      %p73 = scmp.ne.s32.totalorder %s65, %s68
      %p74 = scmp.eq.s32.totalorder %s15, 0
      %p75 = por %p73, %p74
      %p76 = scmp.ne.s32.totalorder %s65, %s68
      %p77 = scmp.eq.s32.totalorder %s20, 1
      %p78 = por %p76, %p77
      %p79 = scmp.ne.s32.totalorder %s68, %s69
      %p80 = scmp.eq.s32.totalorder %s20, 0
      %p81 = por %p79, %p80
      %p82 = scmp.ne.s32.totalorder %s68, %s69
      %p83 = scmp.eq.s32.totalorder %s21, 1
      %p84 = por %p82, %p83
      %p86 = scmp.ne.s32.totalorder %s69, %s85
      %p87 = scmp.eq.s32.totalorder %s21, 0
      %p88 = por %p86, %p87
      %s89 = ssub.s32 %s22, %s34
      %p90 = scmp.eq.s32.totalorder %s89, 0
      %s92 = sadd.s32 %s91, 1
      %s93 = scalar_select %p90, %s91, %s92
      %p96 = pneg %p90
      %p97 = scmp.eq.s32.totalorder %s15, 1
      %p98 = por %p96, %p97
      %p99 = scmp.ne.s32.totalorder %s91, %s94
      %p100 = scmp.eq.s32.totalorder %s15, 0
      %p101 = por %p99, %p100
      %p102 = scmp.ne.s32.totalorder %s91, %s94
      %p103 = scmp.eq.s32.totalorder %s20, 1
      %p104 = por %p102, %p103
      %p105 = scmp.ne.s32.totalorder %s94, %s95
      %p106 = scmp.eq.s32.totalorder %s20, 0
      %p107 = por %p105, %p106
      %p108 = scmp.ne.s32.totalorder %s94, %s95
      %p109 = scmp.eq.s32.totalorder %s21, 1
      %p110 = por %p108, %p109
      %p112 = scmp.ne.s32.totalorder %s95, %s111
      %p113 = scmp.eq.s32.totalorder %s21, 0
      %p114 = por %p112, %p113
      %p115 = scmp.le.s32.totalorder 1, %s15
      %p116 = scmp.lt.s32.totalorder %s15, 3
      %p117 = pnand %p115, %p116
      %p118 = pneg %p117
      // Predicated region
      $region9: #{discriminator_forward.3} parent=5 // pred_check
        _
      $region10: #{discriminator_forward.3} parent=5 // pred_check_branch
        %120 = sbr.rel (%p117) target = $region12
      $region11: #{discriminator_forward.3} parent=5 // pred_region
        %s121 = ssub.s32 %s15, 1
        // Predicated region
        $region13: #{discriminator_forward.3} parent=11 // pred_check
          %p122 = pneg %p81
        $region14: #{discriminator_forward.3} parent=11 // pred_check_branch
          %124 = sbr.rel (%p122) target = $region16
        $region15: #{discriminator_forward.3} parent=11 // pred_region
          %s125 = smul.u32 16, %s25
          %s127 = ssub.s32 1024, 1024
          %128 = vsyncadd [#allocation7], %s127
          %s129 = smul.addr %s125, 64
          %s130 = scalar_lea.hbm %s1, %s129
          %s131 = sshll.u32 [#allocation6], 4
          %s132 = int_to_ptr.vmem [resolvable:$true] %s131
          %137 = dma.hbm_to_vmem [thread:$0]  %s130, 1024, %s132, [#allocation7], 64, 64, 4
        $region16: #{discriminator_forward.3} parent=11 // pred_fallthru
          _
      $region12: #{discriminator_forward.3} parent=5 // pred_fallthru
        _
      %p138 = scmp.lt.s32.totalorder %s15, 2
      // Predicated region
      $region17: #{discriminator_forward.3} parent=5 // pred_check
        %p139 = pneg %p138
      $region18: #{discriminator_forward.3} parent=5 // pred_check_branch
        %141 = sbr.rel (%p139) target = $region20
      $region19: #{discriminator_forward.3} parent=5 // pred_region
        // Predicated region
        $region21: #{discriminator_forward.3} parent=19 // pred_check
          %p142 = pneg %p49
        $region22: #{discriminator_forward.3} parent=19 // pred_check_branch
          %144 = sbr.rel (%p142) target = $region24
        $region23: #{discriminator_forward.3} parent=19 // pred_region
          %s145 = sand.u32 %s39, 1
          %s146 = scalar_lea.sflag [#allocation4], %s145
          %s147 = sand.u32 %s39, 1
          %s148 = smul.addr %s147, 32
          %s149 = scalar_lea.vmem [#allocation3], %s148
          %s150 = smul.u32 8, %s22
          %s152 = ssub.s32 512, 512
          %153 = vsyncadd %s146, %s152
          %s154 = sadd.s32 %s23, %s150
          %s155 = smul.addr %s154, 64
          %s156 = scalar_lea.hbm %s0, %s155
          %s157 = sshll.u32 %s149, 4
          %s158 = int_to_ptr.vmem [resolvable:$true] %s157
          %163 = dma.hbm_to_vmem [thread:$0]  %s156, 512, %s158, %s146, 64, 64, 4
        $region24: #{discriminator_forward.3} parent=19 // pred_fallthru
          _
      $region20: #{discriminator_forward.3} parent=5 // pred_fallthru
        _
      %p164 = scmp.le.s32.totalorder 1, %s15
      %p165 = scmp.lt.s32.totalorder %s15, 3
      %p166 = pnand %p164, %p165
      %p167 = pneg %p166
      // Predicated region
      $region25: #{discriminator_forward.3} parent=5 // pred_check
        _
      $region26: #{discriminator_forward.3} parent=5 // pred_check_branch
        %169 = sbr.rel (%p166) target = $region28
      $region27: #{discriminator_forward.3} parent=5 // pred_region
        %s170 = ssub.s32 %s15, 1
        %s171 = sand.u32 %s42, 1
        %s172 = scalar_lea.sflag [#allocation4], %s171
        %s173 = sand.u32 %s42, 1
        %s174 = smul.addr %s173, 32
        %s175 = scalar_lea.vmem [#allocation3], %s174
        // Predicated region
        $region29: #{discriminator_forward.3} parent=27 // pred_check
          %p176 = pneg %p55
        $region30: #{discriminator_forward.3} parent=27 // pred_check_branch
          %178 = sbr.rel (%p176) target = $region32
        $region31: #{discriminator_forward.3} parent=27 // pred_region
          %179 = dma.done %s172, 512
        $region32: #{discriminator_forward.3} parent=27 // pred_fallthru
          _
        // Predicated region
        $region33: #{discriminator_forward.3} parent=27 // pred_check
          %p180 = pneg %p81
        $region34: #{discriminator_forward.3} parent=27 // pred_check_branch
          %182 = sbr.rel (%p180) target = $region36
        $region35: #{discriminator_forward.3} parent=27 // pred_region
          %183 = dma.done [#allocation7], 1024
        $region36: #{discriminator_forward.3} parent=27 // pred_fallthru
          _
        %s184 = sand.u32 %s42, 1
        %s185 = scalar_lea.sflag [#allocation4], %s184
        %s186 = sand.u32 %s42, 1
        %s187 = smul.addr %s186, 32
        %s188 = scalar_lea.vmem [#allocation3], %s187
        %p189 = pneg %p55
        %p190 = pneg %p52
        %p191 = pneg %p81
        %p192 = pneg %p78
        %p193 = pneg %p107
        %p194 = pneg %p104
        %s195 = sand.u32 %s94, 1
        %s196 = scalar_lea.sflag [#allocation5], %s195
        %s197 = sand.u32 %s94, 1
        %s198 = smul.addr %s197, 32
        %s199 = scalar_lea.vmem [#allocation8], %s198
        %s200 = smul.u32 8, %s24
        %s201 = smul.u32 16, %s25
        %s202 = smul.u32 8, %s24
        %p204 = scmp.eq.s32.totalorder %s25, 0
        // Predicated region
        $region37: #{discriminator_forward.3} parent=27 // pred_check
          %p205 = pneg %p204
        $region38: #{discriminator_forward.3} parent=27 // pred_check_branch
          %207 = sbr.rel (%p205) target = $region40
        $region39: #{discriminator_forward.3} parent=27 // pred_region
          %208 = vst [vmem:[#allocation2] sm:$0xff] 0.0
          %209 = vst [vmem:[#allocation2 + $0x8] sm:$0xff] 0.0
          %210 = vst [vmem:[#allocation2 + $0x10] sm:$0xff] 0.0
          %211 = vst [vmem:[#allocation2 + $0x18] sm:$0xff] 0.0
          %212 = vst [vmem:[#allocation2 + $0x20] sm:$0xff] 0.0
          %213 = vst [vmem:[#allocation2 + $0x28] sm:$0xff] 0.0
          %214 = vst [vmem:[#allocation2 + $0x30] sm:$0xff] 0.0
          %215 = vst [vmem:[#allocation2 + $0x38] sm:$0xff] 0.0
        $region40: #{discriminator_forward.3} parent=27 // pred_fallthru
          _
        %v216 = vld [vmem:[#allocation2] sm:$0xff]
        %v217 = vld [vmem:[#allocation2 + $0x8] sm:$0xff]
        %v218 = vld [vmem:[#allocation2 + $0x10] sm:$0xff]
        %v219 = vld [vmem:[#allocation2 + $0x18] sm:$0xff]
        %v220 = vld [vmem:[#allocation2 + $0x20] sm:$0xff]
        %v221 = vld [vmem:[#allocation2 + $0x28] sm:$0xff]
        %v222 = vld [vmem:[#allocation2 + $0x30] sm:$0xff]
        %v223 = vld [vmem:[#allocation2 + $0x38] sm:$0xff]
        %v224 = vld [vmem:[%s175] sm:$0xf]
        %v225 = vld [vmem:[%s175 + $0x4] sm:$0xf]
        %v226 = vld [vmem:[%s175 + $0x8] sm:$0xf]
        %v227 = vld [vmem:[%s175 + $0xc] sm:$0xf]
        %v228 = vld [vmem:[%s175 + $0x10] sm:$0xf]
        %v229 = vld [vmem:[%s175 + $0x14] sm:$0xf]
        %v230 = vld [vmem:[%s175 + $0x18] sm:$0xf]
        %v231 = vld [vmem:[%s175 + $0x1c] sm:$0xf]
        %v232 = vld [vmem:[#allocation6] sm:$0xf]
        %v233 = vld [vmem:[#allocation6 + $0x4] sm:$0xf]
        %v234 = vld [vmem:[#allocation6 + $0x8] sm:$0xf]
        %v235 = vld [vmem:[#allocation6 + $0xc] sm:$0xf]
        %v236 = vld [vmem:[#allocation6 + $0x10] sm:$0xf]
        %v237 = vld [vmem:[#allocation6 + $0x14] sm:$0xf]
        %v238 = vld [vmem:[#allocation6 + $0x18] sm:$0xf]
        %v239 = vld [vmem:[#allocation6 + $0x1c] sm:$0xf]
        %v240 = vld [vmem:[#allocation6 + $0x20] sm:$0xf]
        %v241 = vld [vmem:[#allocation6 + $0x24] sm:$0xf]
        %v242 = vld [vmem:[#allocation6 + $0x28] sm:$0xf]
        %v243 = vld [vmem:[#allocation6 + $0x2c] sm:$0xf]
        %v244 = vld [vmem:[#allocation6 + $0x30] sm:$0xf]
        %v245 = vld [vmem:[#allocation6 + $0x34] sm:$0xf]
        %v246 = vld [vmem:[#allocation6 + $0x38] sm:$0xf]
        %v247 = vld [vmem:[#allocation6 + $0x3c] sm:$0xf]
        %v256 = vunpack.c.l.b16 %v224
        %v257 = vunpack.c.l.b16 %v225
        %v258 = vunpack.c.l.b16 %v226
        %v259 = vunpack.c.l.b16 %v227
        %v260 = vunpack.c.l.b16 %v228
        %v261 = vunpack.c.l.b16 %v229
        %v262 = vunpack.c.l.b16 %v230
        %v263 = vunpack.c.l.b16 %v231
        %v264 = vpack.c.b16 %v257, %v256
        %v265 = vpack.c.b16 %v259, %v258
        %v266 = vpack.c.b16 %v261, %v260
        %v267 = vpack.c.b16 %v263, %v262
        %v288 = vunpack.c.l.b16 %v232
        %v289 = vunpack.c.l.b16 %v233
        %v290 = vunpack.c.l.b16 %v234
        %v291 = vunpack.c.l.b16 %v235
        %v292 = vunpack.c.l.b16 %v236
        %v293 = vunpack.c.l.b16 %v237
        %v294 = vunpack.c.l.b16 %v238
        %v295 = vunpack.c.l.b16 %v239
        %v296 = vunpack.c.l.b16 %v240
        %v297 = vunpack.c.l.b16 %v241
        %v298 = vunpack.c.l.b16 %v242
        %v299 = vunpack.c.l.b16 %v243
        %v300 = vunpack.c.l.b16 %v244
        %v301 = vunpack.c.l.b16 %v245
        %v302 = vunpack.c.l.b16 %v246
        %v303 = vunpack.c.l.b16 %v247
        %v304 = vpack.c.b16 %v289, %v288
        %v305 = vpack.c.b16 %v291, %v290
        %v306 = vpack.c.b16 %v293, %v292
        %v307 = vpack.c.b16 %v295, %v294
        %v308 = vpack.c.b16 %v297, %v296
        %v309 = vpack.c.b16 %v299, %v298
        %v310 = vpack.c.b16 %v301, %v300
        %v311 = vpack.c.b16 %v303, %v302
        %320 = vmatprep.subr.bf16.mxu0 0
        %321 = vmatpush1.bf16.msra.mxu0 %v304
        %322 = vmatprep.subr.bf16.mxu0 0
        %323 = vmatpush1.bf16.msra.mxu0 %v305
        %324 = vmatprep.subr.bf16.mxu0 0
        %325 = vmatpush1.bf16.msra.mxu0 %v306
        %326 = vmatprep.subr.bf16.mxu0 0
        %327 = vmatpush1.bf16.msra.mxu0 %v307
        %328 = vmatprep.subr.bf16.mxu0 0
        %329 = vmatpush1.bf16.msra.mxu0 %v308
        %330 = vmatprep.subr.bf16.mxu0 0
        %331 = vmatpush1.bf16.msra.mxu0 %v309
        %332 = vmatprep.subr.bf16.mxu0 0
        %333 = vmatpush1.bf16.msra.mxu0 %v310
        %334 = vmatprep.subr.bf16.mxu0 0
        %335 = vmatpush1.bf16.msra.mxu0 %v311
        %336 = vmatprep.subr.bf16.mxu0 0
        %337 = vmatpush1.bf16.msra.mxu0 0
        %338 = vmatprep.subr.bf16.mxu0 0
        %339 = vmatpush1.bf16.msra.mxu0 0
        %340 = vmatprep.subr.bf16.mxu0 0
        %341 = vmatpush1.bf16.msra.mxu0 0
        %342 = vmatprep.subr.bf16.mxu0 0
        %343 = vmatpush1.bf16.msra.mxu0 0
        %344 = vmatprep.subr.bf16.mxu0 0
        %345 = vmatpush1.bf16.msra.mxu0 0
        %346 = vmatprep.subr.bf16.mxu0 0
        %347 = vmatpush1.bf16.msra.mxu0 0
        %348 = vmatprep.subr.bf16.mxu0 0
        %349 = vmatpush1.bf16.msra.mxu0 0
        %350 = vmatprep.subr.bf16.mxu0 0
        %351 = vmatpush1.bf16.msra.mxu0 0
        %352 = vmatprep.mubr.bf16.mxu0 0
        %353 = vmatmul.mubr.bf16.gmra.mrb[0].mxu0 %v264
        %v354 = vpop.f32.mrb[0].mxu0
        %v355 = vadd.f32 0.0, %v354
        %v356 = vpop.f32.mrb[0].mxu0
        %v357 = vpop.f32.mrb[0].mxu0
        %v358 = vadd.f32 0.0, %v357
        %v359 = vpop.f32.mrb[0].mxu0
        %360 = vmatprep.mubr.bf16.mxu0 0
        %361 = vmatmul.mubr.bf16.gmra.mrb[0].mxu0 %v265
        %v362 = vpop.f32.mrb[0].mxu0
        %v363 = vadd.f32 0.0, %v362
        %v364 = vpop.f32.mrb[0].mxu0
        %v365 = vpop.f32.mrb[0].mxu0
        %v366 = vadd.f32 0.0, %v365
        %v367 = vpop.f32.mrb[0].mxu0
        %368 = vmatprep.mubr.bf16.mxu0 0
        %369 = vmatmul.mubr.bf16.gmra.mrb[0].mxu0 %v266
        %v370 = vpop.f32.mrb[0].mxu0
        %v371 = vadd.f32 0.0, %v370
        %v372 = vpop.f32.mrb[0].mxu0
        %v373 = vpop.f32.mrb[0].mxu0
        %v374 = vadd.f32 0.0, %v373
        %v375 = vpop.f32.mrb[0].mxu0
        %376 = vmatprep.mubr.bf16.mxu0 0
        %377 = vmatmul.mubr.bf16.gmra.mrb[0].mxu0 %v267
        %v378 = vpop.f32.mrb[0].mxu0
        %v379 = vadd.f32 0.0, %v378
        %v380 = vpop.f32.mrb[0].mxu0
        %v381 = vpop.f32.mrb[0].mxu0
        %v382 = vadd.f32 0.0, %v381
        %v383 = vpop.f32.mrb[0].mxu0
        %384 = vdwg.mxu0
        %v385 = vadd.f32 %v216, %v355
        %v386 = vadd.f32 %v217, %v358
        %v387 = vadd.f32 %v218, %v363
        %v388 = vadd.f32 %v219, %v366
        %v389 = vadd.f32 %v220, %v371
        %v390 = vadd.f32 %v221, %v374
        %v391 = vadd.f32 %v222, %v379
        %v392 = vadd.f32 %v223, %v382
        %393 = vst [vmem:[#allocation2] sm:$0xff] %v385
        %394 = vst [vmem:[#allocation2 + $0x8] sm:$0xff] %v386
        %395 = vst [vmem:[#allocation2 + $0x10] sm:$0xff] %v387
        %396 = vst [vmem:[#allocation2 + $0x18] sm:$0xff] %v388
        %397 = vst [vmem:[#allocation2 + $0x20] sm:$0xff] %v389
        %398 = vst [vmem:[#allocation2 + $0x28] sm:$0xff] %v390
        %399 = vst [vmem:[#allocation2 + $0x30] sm:$0xff] %v391
        %400 = vst [vmem:[#allocation2 + $0x38] sm:$0xff] %v392
        // Predicated region
        $region41: #{discriminator_forward.3} parent=27 // pred_check
          %p401 = pneg %p204
        $region42: #{discriminator_forward.3} parent=27 // pred_check_branch
          %403 = sbr.rel (%p401) target = $region44
        $region43: #{discriminator_forward.3} parent=27 // pred_region
          %v404 = vld [vmem:[#allocation2] sm:$0xff]
          %v405 = vld [vmem:[#allocation2 + $0x8] sm:$0xff]
          %v406 = vld [vmem:[#allocation2 + $0x10] sm:$0xff]
          %v407 = vld [vmem:[#allocation2 + $0x18] sm:$0xff]
          %v408 = vld [vmem:[#allocation2 + $0x20] sm:$0xff]
          %v409 = vld [vmem:[#allocation2 + $0x28] sm:$0xff]
          %v410 = vld [vmem:[#allocation2 + $0x30] sm:$0xff]
          %v411 = vld [vmem:[#allocation2 + $0x38] sm:$0xff]
          %vm412 = vcmp.gt.f32.partialorder %v404, 0.0
          %vm413 = vcmp.gt.f32.partialorder %v405, 0.0
          %vm414 = vcmp.gt.f32.partialorder %v406, 0.0
          %vm415 = vcmp.gt.f32.partialorder %v407, 0.0
          %vm416 = vcmp.gt.f32.partialorder %v408, 0.0
          %vm417 = vcmp.gt.f32.partialorder %v409, 0.0
          %vm418 = vcmp.gt.f32.partialorder %v410, 0.0
          %vm419 = vcmp.gt.f32.partialorder %v411, 0.0
          %v420 = vmul.f32 %v404, 0.2
          %v421 = vmul.f32 %v405, 0.2
          %v422 = vmul.f32 %v406, 0.2
          %v423 = vmul.f32 %v407, 0.2
          %v424 = vmul.f32 %v408, 0.2
          %v425 = vmul.f32 %v409, 0.2
          %v426 = vmul.f32 %v410, 0.2
          %v427 = vmul.f32 %v411, 0.2
          %v428 = vsel %vm412, %v404, %v420
          %v429 = vsel %vm413, %v405, %v421
          %v430 = vsel %vm414, %v406, %v422
          %v431 = vsel %vm415, %v407, %v423
          %v432 = vsel %vm416, %v408, %v424
          %v433 = vsel %vm417, %v409, %v425
          %v434 = vsel %vm418, %v410, %v426
          %v435 = vsel %vm419, %v411, %v427
          %v436 = vpack.c.bf16 %v429, %v428
          %v437 = vpack.c.bf16 %v431, %v430
          %v438 = vpack.c.bf16 %v433, %v432
          %v439 = vpack.c.bf16 %v435, %v434
          %v444 = vunpack.c.l.b16 %v436
          %v445 = vunpack.c.h.b16 %v436
          %v446 = vunpack.c.l.b16 %v437
          %v447 = vunpack.c.h.b16 %v437
          %v448 = vunpack.c.l.b16 %v438
          %v449 = vunpack.c.h.b16 %v438
          %v450 = vunpack.c.l.b16 %v439
          %v451 = vunpack.c.h.b16 %v439
          %v452 = vpack.c.b16 %v444, %v444
          %v453 = vpack.c.b16 %v445, %v445
          %v454 = vpack.c.b16 %v446, %v446
          %v455 = vpack.c.b16 %v447, %v447
          %v456 = vpack.c.b16 %v448, %v448
          %v457 = vpack.c.b16 %v449, %v449
          %v458 = vpack.c.b16 %v450, %v450
          %v459 = vpack.c.b16 %v451, %v451
          %468 = vst [vmem:[%s199] sm:$0xf] %v452
          %469 = vst [vmem:[%s199 + $0x4] sm:$0xf] %v453
          %470 = vst [vmem:[%s199 + $0x8] sm:$0xf] %v454
          %471 = vst [vmem:[%s199 + $0xc] sm:$0xf] %v455
          %472 = vst [vmem:[%s199 + $0x10] sm:$0xf] %v456
          %473 = vst [vmem:[%s199 + $0x14] sm:$0xf] %v457
          %474 = vst [vmem:[%s199 + $0x18] sm:$0xf] %v458
          %475 = vst [vmem:[%s199 + $0x1c] sm:$0xf] %v459
        $region44: #{discriminator_forward.3} parent=27 // pred_fallthru
          _
        %s476 = sand.u32 %s94, 1
        %s477 = scalar_lea.sflag [#allocation5], %s476
        %s478 = sand.u32 %s94, 1
        %s479 = smul.addr %s478, 32
        %s480 = scalar_lea.vmem [#allocation8], %s479
        // Predicated region
        $region45: #{discriminator_forward.3} parent=27 // pred_check
          %p481 = pneg %p104
        $region46: #{discriminator_forward.3} parent=27 // pred_check_branch
          %483 = sbr.rel (%p481) target = $region48
        $region47: #{discriminator_forward.3} parent=27 // pred_region
          %s484 = smul.u32 8, %s24
          %s486 = ssub.s32 512, 512
          %487 = vsyncadd %s477, %s486
          %s488 = smul.addr %s484, 64
          %s489 = scalar_lea.hbm %s2, %s488
          %s490 = sshll.u32 %s480, 4
          %s491 = int_to_ptr.vmem [resolvable:$true] %s490
          %496 = dma.vmem_to_hbm [thread:$0]  %s491, 512, %s489, %s477, 64, 64, 4
        $region48: #{discriminator_forward.3} parent=27 // pred_fallthru
          _
      $region28: #{discriminator_forward.3} parent=5 // pred_fallthru
        _
      %p497 = scmp.le.s32.totalorder 2, %s15
      // Predicated region
      $region49: #{discriminator_forward.3} parent=5 // pred_check
        %p498 = pneg %p497
      $region50: #{discriminator_forward.3} parent=5 // pred_check_branch
        %500 = sbr.rel (%p498) target = $region52
      $region51: #{discriminator_forward.3} parent=5 // pred_region
        %s501 = ssub.s32 %s15, 2
        // Predicated region
        $region53: #{discriminator_forward.3} parent=51 // pred_check
          %p502 = pneg %p110
        $region54: #{discriminator_forward.3} parent=51 // pred_check_branch
          %504 = sbr.rel (%p502) target = $region56
        $region55: #{discriminator_forward.3} parent=51 // pred_region
          %s505 = sand.u32 %s95, 1
          %s506 = scalar_lea.sflag [#allocation5], %s505
          %s507 = sand.u32 %s95, 1
          %s508 = smul.addr %s507, 32
          %s509 = scalar_lea.vmem [#allocation8], %s508
          %510 = dma.done %s506, 512
        $region56: #{discriminator_forward.3} parent=51 // pred_fallthru
          _
      $region52: #{discriminator_forward.3} parent=5 // pred_fallthru
        _
    $region6: #{discriminator_forward.3} parent=1 // loop_footer
      %s19 = sadd.s32 1, %s15
    $region7: #{discriminator_forward.3} parent=1 // loop_footer_branch
      %14 = sbr.rel target = $region3
    $region8: #{discriminator_forward.3} parent=1 // loop_exit
      _
    %511 = vsyncpa [#allocation4], 1
    %s512 = scalar_lea.sflag [#allocation4], 1
    %513 = vsyncpa %s512, 1
    %514 = vsyncpa [#allocation7], 1
    %515 = vsyncpa [#allocation5], 1
    %s516 = scalar_lea.sflag [#allocation5], 1
    %517 = vsyncpa %s516, 1

// kernel: discriminator_forward.4
$region0: #{discriminator_forward.4}
  #allocation0 [shape = 'u32[]', space=smem, size = 0x4, offset = 0x4, fixed_abs, tag = 'smem constant byte address 0x4 - core index']
  #allocation1 [shape = 'u32[144,128]{1,0:T(1,128)}', space=vmem, size = 0x12000, scoped, tag = 'internal scratch']
  #allocation2 [shape = 'f32[16,128]{1,0:T(8,128)}', space=vmem, size = 0x2000, scoped, tag = 'scratch operand']
  %s0 = inlined_call_operand.hbm [shape: bf16[32,128], index: 0, kind: input, shape index: {}]
  %s1 = inlined_call_operand.hbm [shape: bf16[128,128], index: 1, kind: input, shape index: {}]
  %s2 = inlined_call_operand.hbm [shape: bf16[32,128], index: 2, kind: output, shape index: {}]
  %s3 = sld [smem:[#allocation0]]
  $region57: #{discriminator_forward.4} parent=0
    _
  %s5 = ssub.s32 1, %s3
  %s6 = scalar_select 0, %s5, %s3
  $region1: #{discriminator_forward.4} parent=0
    #allocation3 [shape = 'u8[8192]{0}', space=vmem, size = 0x2000, scoped, tag = 'input window, operand 0']
    #allocation4 [shape = 's32[2]{0}', space=sflag, size = 0x8, scoped, tag = 'scoped memory for discriminator_forward.4']
    #allocation5 [shape = 's32[2]{0}', space=sflag, size = 0x8, scoped, tag = 'scoped memory for discriminator_forward.4']
    #allocation6 [shape = 'u8[32768]{0}', space=vmem, size = 0x8000, scoped, tag = 'input window, operand 1, single buffered']
    #allocation7 [shape = 's32[1]{0}', space=sflag, size = 0x4, scoped, tag = 'scoped memory for discriminator_forward.4']
    #allocation8 [shape = 'u8[8192]{0}', space=vmem, size = 0x2000, scoped, tag = 'output window, operand 0']
    %7 = vsyncpa [#allocation4], 0
    %s8 = scalar_lea.sflag [#allocation4], 1
    %9 = vsyncpa %s8, 0
    %10 = vsyncpa [#allocation7], 0
    %11 = vsyncpa [#allocation5], 0
    %s12 = scalar_lea.sflag [#allocation5], 1
    %13 = vsyncpa %s12, 0
    loop: start=0, step=1, limit=4
    $region2: #{discriminator_forward.4} parent=1 // loop_pre_header
      _
    $region3: #{discriminator_forward.4} parent=1 // loop_header
      %s15 = sphi 0, %s19
      %p16 = scmp.ge.s32.totalorder %s15, 4
      %s22 = sphi 0, %s34
      %s23 = sphi 0, %s30
      %s24 = sphi 0, %s22
      %s25 = sphi 0, %s23
      %s26 = sphi 0, %s24
      %s27 = sphi 0, %s25
      %s39 = sphi 0, %s41
      %s42 = sphi 0, %s39
      %s43 = sphi 0, %s42
      %s59 = sphi 0, %s43
      %s65 = sphi 0, %s67
      %s68 = sphi 0, %s65
      %s69 = sphi 0, %s68
      %s85 = sphi 0, %s69
      %s91 = sphi 0, %s93
      %s94 = sphi 0, %s91
      %s95 = sphi 0, %s94
      %s111 = sphi 0, %s95
    $region4: #{discriminator_forward.4} parent=1 // loop_header_branch
      %18 = sbr.rel (%p16) target = $region8
    $region5: #{discriminator_forward.4} parent=1 // loop_body
      %s20 = ssub.s32 %s15, 1
      %s21 = ssub.s32 %s15, 2
      %s28 = sadd.s32 1, %s23
      %p29 = scmp.ge.s32.totalorder %s28, 1
      %s30 = scalar_select %p29, 0, %s28
      %s31 = sadd.s32 1, %s22
      %s32 = scalar_select %p29, %s31, %s22
      %p33 = scmp.ge.s32.totalorder %s32, 2
      %s34 = scalar_select %p33, 0, %s32
      %s35 = ssub.s32 %s22, %s34
      %s36 = ssub.s32 %s23, %s30
      %s37 = sor.u32 %s35, %s36
      %p38 = scmp.eq.s32.totalorder %s37, 0
      %s40 = sadd.s32 %s39, 1
      %s41 = scalar_select %p38, %s39, %s40
      %p44 = pneg %p38
      %p45 = scmp.eq.s32.totalorder %s15, 1
      %p46 = por %p44, %p45
      %p47 = scmp.ne.s32.totalorder %s39, %s42
      %p48 = scmp.eq.s32.totalorder %s15, 0
      %p49 = por %p47, %p48
      %p50 = scmp.ne.s32.totalorder %s39, %s42
      %p51 = scmp.eq.s32.totalorder %s20, 1
      %p52 = por %p50, %p51
      %p53 = scmp.ne.s32.totalorder %s42, %s43
      %p54 = scmp.eq.s32.totalorder %s20, 0
      %p55 = por %p53, %p54
      %p56 = scmp.ne.s32.totalorder %s42, %s43
      %p57 = scmp.eq.s32.totalorder %s21, 1
      %p58 = por %p56, %p57
      %p60 = scmp.ne.s32.totalorder %s43, %s59
      %p61 = scmp.eq.s32.totalorder %s21, 0
      %p62 = por %p60, %p61
      %s63 = ssub.s32 %s23, %s30
      %p64 = scmp.eq.s32.totalorder %s63, 0
      %s66 = sadd.s32 %s65, 1
      %s67 = scalar_select %p64, %s65, %s66
      %p70 = pneg %p64
      %p71 = scmp.eq.s32.totalorder %s15, 1
      %p72 = por %p70, %p71
      %p73 = scmp.ne.s32.totalorder %s65, %s68
      %p74 = scmp.eq.s32.totalorder %s15, 0
      %p75 = por %p73, %p74
      %p76 = scmp.ne.s32.totalorder %s65, %s68
      %p77 = scmp.eq.s32.totalorder %s20, 1
      %p78 = por %p76, %p77
      %p79 = scmp.ne.s32.totalorder %s68, %s69
      %p80 = scmp.eq.s32.totalorder %s20, 0
      %p81 = por %p79, %p80
      %p82 = scmp.ne.s32.totalorder %s68, %s69
      %p83 = scmp.eq.s32.totalorder %s21, 1
      %p84 = por %p82, %p83
      %p86 = scmp.ne.s32.totalorder %s69, %s85
      %p87 = scmp.eq.s32.totalorder %s21, 0
      %p88 = por %p86, %p87
      %s89 = ssub.s32 %s22, %s34
      %p90 = scmp.eq.s32.totalorder %s89, 0
      %s92 = sadd.s32 %s91, 1
      %s93 = scalar_select %p90, %s91, %s92
      %p96 = pneg %p90
      %p97 = scmp.eq.s32.totalorder %s15, 1
      %p98 = por %p96, %p97
      %p99 = scmp.ne.s32.totalorder %s91, %s94
      %p100 = scmp.eq.s32.totalorder %s15, 0
      %p101 = por %p99, %p100
      %p102 = scmp.ne.s32.totalorder %s91, %s94
      %p103 = scmp.eq.s32.totalorder %s20, 1
      %p104 = por %p102, %p103
      %p105 = scmp.ne.s32.totalorder %s94, %s95
      %p106 = scmp.eq.s32.totalorder %s20, 0
      %p107 = por %p105, %p106
      %p108 = scmp.ne.s32.totalorder %s94, %s95
      %p109 = scmp.eq.s32.totalorder %s21, 1
      %p110 = por %p108, %p109
      %p112 = scmp.ne.s32.totalorder %s95, %s111
      %p113 = scmp.eq.s32.totalorder %s21, 0
      %p114 = por %p112, %p113
      %p115 = scmp.le.s32.totalorder 1, %s15
      %p116 = scmp.lt.s32.totalorder %s15, 3
      %p117 = pnand %p115, %p116
      %p118 = pneg %p117
      // Predicated region
      $region9: #{discriminator_forward.4} parent=5 // pred_check
        _
      $region10: #{discriminator_forward.4} parent=5 // pred_check_branch
        %120 = sbr.rel (%p117) target = $region12
      $region11: #{discriminator_forward.4} parent=5 // pred_region
        %s121 = ssub.s32 %s15, 1
        // Predicated region
        $region13: #{discriminator_forward.4} parent=11 // pred_check
          %p122 = pneg %p81
        $region14: #{discriminator_forward.4} parent=11 // pred_check_branch
          %124 = sbr.rel (%p122) target = $region16
        $region15: #{discriminator_forward.4} parent=11 // pred_region
          %s125 = smul.u32 16, %s25
          %s127 = ssub.s32 1024, 1024
          %128 = vsyncadd [#allocation7], %s127
          %s129 = smul.addr %s125, 64
          %s130 = scalar_lea.hbm %s1, %s129
          %s131 = sshll.u32 [#allocation6], 4
          %s132 = int_to_ptr.vmem [resolvable:$true] %s131
          %137 = dma.hbm_to_vmem [thread:$0]  %s130, 1024, %s132, [#allocation7], 64, 64, 4
        $region16: #{discriminator_forward.4} parent=11 // pred_fallthru
          _
      $region12: #{discriminator_forward.4} parent=5 // pred_fallthru
        _
      %p138 = scmp.lt.s32.totalorder %s15, 2
      // Predicated region
      $region17: #{discriminator_forward.4} parent=5 // pred_check
        %p139 = pneg %p138
      $region18: #{discriminator_forward.4} parent=5 // pred_check_branch
        %141 = sbr.rel (%p139) target = $region20
      $region19: #{discriminator_forward.4} parent=5 // pred_region
        // Predicated region
        $region21: #{discriminator_forward.4} parent=19 // pred_check
          %p142 = pneg %p49
        $region22: #{discriminator_forward.4} parent=19 // pred_check_branch
          %144 = sbr.rel (%p142) target = $region24
        $region23: #{discriminator_forward.4} parent=19 // pred_region
          %s145 = sand.u32 %s39, 1
          %s146 = scalar_lea.sflag [#allocation4], %s145
          %s147 = sand.u32 %s39, 1
          %s148 = smul.addr %s147, 8
          %s149 = scalar_lea.vmem [#allocation3], %s148
          %s150 = smul.u32 2, %s22
          %s152 = ssub.s32 128, 128
          %153 = vsyncadd %s146, %s152
          %s154 = sadd.s32 %s23, %s150
          %s155 = smul.addr %s154, 64
          %s156 = scalar_lea.hbm %s0, %s155
          %s157 = sshll.u32 %s149, 4
          %s158 = int_to_ptr.vmem [resolvable:$true] %s157
          %163 = dma.hbm_to_vmem [thread:$0]  %s156, 128, %s158, %s146, 64, 64, 4
        $region24: #{discriminator_forward.4} parent=19 // pred_fallthru
          _
      $region20: #{discriminator_forward.4} parent=5 // pred_fallthru
        _
      %p164 = scmp.le.s32.totalorder 1, %s15
      %p165 = scmp.lt.s32.totalorder %s15, 3
      %p166 = pnand %p164, %p165
      %p167 = pneg %p166
      // Predicated region
      $region25: #{discriminator_forward.4} parent=5 // pred_check
        _
      $region26: #{discriminator_forward.4} parent=5 // pred_check_branch
        %169 = sbr.rel (%p166) target = $region28
      $region27: #{discriminator_forward.4} parent=5 // pred_region
        %s170 = ssub.s32 %s15, 1
        %s171 = sand.u32 %s42, 1
        %s172 = scalar_lea.sflag [#allocation4], %s171
        %s173 = sand.u32 %s42, 1
        %s174 = smul.addr %s173, 8
        %s175 = scalar_lea.vmem [#allocation3], %s174
        // Predicated region
        $region29: #{discriminator_forward.4} parent=27 // pred_check
          %p176 = pneg %p55
        $region30: #{discriminator_forward.4} parent=27 // pred_check_branch
          %178 = sbr.rel (%p176) target = $region32
        $region31: #{discriminator_forward.4} parent=27 // pred_region
          %179 = dma.done %s172, 128
        $region32: #{discriminator_forward.4} parent=27 // pred_fallthru
          _
        // Predicated region
        $region33: #{discriminator_forward.4} parent=27 // pred_check
          %p180 = pneg %p81
        $region34: #{discriminator_forward.4} parent=27 // pred_check_branch
          %182 = sbr.rel (%p180) target = $region36
        $region35: #{discriminator_forward.4} parent=27 // pred_region
          %183 = dma.done [#allocation7], 1024
        $region36: #{discriminator_forward.4} parent=27 // pred_fallthru
          _
        %s184 = sand.u32 %s42, 1
        %s185 = scalar_lea.sflag [#allocation4], %s184
        %s186 = sand.u32 %s42, 1
        %s187 = smul.addr %s186, 8
        %s188 = scalar_lea.vmem [#allocation3], %s187
        %p189 = pneg %p55
        %p190 = pneg %p52
        %p191 = pneg %p81
        %p192 = pneg %p78
        %p193 = pneg %p107
        %p194 = pneg %p104
        %s195 = sand.u32 %s94, 1
        %s196 = scalar_lea.sflag [#allocation5], %s195
        %s197 = sand.u32 %s94, 1
        %s198 = smul.addr %s197, 8
        %s199 = scalar_lea.vmem [#allocation8], %s198
        %s200 = smul.u32 2, %s24
        %s201 = smul.u32 16, %s25
        %s202 = smul.u32 2, %s24
        %p204 = scmp.eq.s32.totalorder %s25, 0
        // Predicated region
        $region37: #{discriminator_forward.4} parent=27 // pred_check
          %p205 = pneg %p204
        $region38: #{discriminator_forward.4} parent=27 // pred_check_branch
          %207 = sbr.rel (%p205) target = $region40
        $region39: #{discriminator_forward.4} parent=27 // pred_region
          %208 = vst [vmem:[#allocation2] sm:$0xff] 0.0
          %209 = vst [vmem:[#allocation2 + $0x8] sm:$0xff] 0.0
        $region40: #{discriminator_forward.4} parent=27 // pred_fallthru
          _
        %v210 = vld [vmem:[#allocation2] sm:$0xff]
        %v211 = vld [vmem:[#allocation2 + $0x8] sm:$0xff]
        %v212 = vld [vmem:[%s175] sm:$0xf]
        %v213 = vld [vmem:[%s175 + $0x4] sm:$0xf]
        %v214 = vld [vmem:[#allocation6] sm:$0xf]
        %v215 = vld [vmem:[#allocation6 + $0x4] sm:$0xf]
        %v216 = vld [vmem:[#allocation6 + $0x8] sm:$0xf]
        %v217 = vld [vmem:[#allocation6 + $0xc] sm:$0xf]
        %v218 = vld [vmem:[#allocation6 + $0x10] sm:$0xf]
        %v219 = vld [vmem:[#allocation6 + $0x14] sm:$0xf]
        %v220 = vld [vmem:[#allocation6 + $0x18] sm:$0xf]
        %v221 = vld [vmem:[#allocation6 + $0x1c] sm:$0xf]
        %v222 = vld [vmem:[#allocation6 + $0x20] sm:$0xf]
        %v223 = vld [vmem:[#allocation6 + $0x24] sm:$0xf]
        %v224 = vld [vmem:[#allocation6 + $0x28] sm:$0xf]
        %v225 = vld [vmem:[#allocation6 + $0x2c] sm:$0xf]
        %v226 = vld [vmem:[#allocation6 + $0x30] sm:$0xf]
        %v227 = vld [vmem:[#allocation6 + $0x34] sm:$0xf]
        %v228 = vld [vmem:[#allocation6 + $0x38] sm:$0xf]
        %v229 = vld [vmem:[#allocation6 + $0x3c] sm:$0xf]
        %v232 = vunpack.c.l.b16 %v212
        %v233 = vunpack.c.l.b16 %v213
        %v234 = vpack.c.b16 %v233, %v232
        %v252 = vunpack.c.l.b16 %v214
        %v253 = vunpack.c.l.b16 %v215
        %v254 = vunpack.c.l.b16 %v216
        %v255 = vunpack.c.l.b16 %v217
        %v256 = vunpack.c.l.b16 %v218
        %v257 = vunpack.c.l.b16 %v219
        %v258 = vunpack.c.l.b16 %v220
        %v259 = vunpack.c.l.b16 %v221
        %v260 = vunpack.c.l.b16 %v222
        %v261 = vunpack.c.l.b16 %v223
        %v262 = vunpack.c.l.b16 %v224
        %v263 = vunpack.c.l.b16 %v225
        %v264 = vunpack.c.l.b16 %v226
        %v265 = vunpack.c.l.b16 %v227
        %v266 = vunpack.c.l.b16 %v228
        %v267 = vunpack.c.l.b16 %v229
        %v268 = vpack.c.b16 %v253, %v252
        %v269 = vpack.c.b16 %v255, %v254
        %v270 = vpack.c.b16 %v257, %v256
        %v271 = vpack.c.b16 %v259, %v258
        %v272 = vpack.c.b16 %v261, %v260
        %v273 = vpack.c.b16 %v263, %v262
        %v274 = vpack.c.b16 %v265, %v264
        %v275 = vpack.c.b16 %v267, %v266
        %284 = vmatprep.subr.bf16.mxu0 0
        %285 = vmatpush1.bf16.msra.mxu0 %v268
        %286 = vmatprep.subr.bf16.mxu0 0
        %287 = vmatpush1.bf16.msra.mxu0 %v269
        %288 = vmatprep.subr.bf16.mxu0 0
        %289 = vmatpush1.bf16.msra.mxu0 %v270
        %290 = vmatprep.subr.bf16.mxu0 0
        %291 = vmatpush1.bf16.msra.mxu0 %v271
        %292 = vmatprep.subr.bf16.mxu0 0
        %293 = vmatpush1.bf16.msra.mxu0 %v272
        %294 = vmatprep.subr.bf16.mxu0 0
        %295 = vmatpush1.bf16.msra.mxu0 %v273
        %296 = vmatprep.subr.bf16.mxu0 0
        %297 = vmatpush1.bf16.msra.mxu0 %v274
        %298 = vmatprep.subr.bf16.mxu0 0
        %299 = vmatpush1.bf16.msra.mxu0 %v275
        %300 = vmatprep.subr.bf16.mxu0 0
        %301 = vmatpush1.bf16.msra.mxu0 0
        %302 = vmatprep.subr.bf16.mxu0 0
        %303 = vmatpush1.bf16.msra.mxu0 0
        %304 = vmatprep.subr.bf16.mxu0 0
        %305 = vmatpush1.bf16.msra.mxu0 0
        %306 = vmatprep.subr.bf16.mxu0 0
        %307 = vmatpush1.bf16.msra.mxu0 0
        %308 = vmatprep.subr.bf16.mxu0 0
        %309 = vmatpush1.bf16.msra.mxu0 0
        %310 = vmatprep.subr.bf16.mxu0 0
        %311 = vmatpush1.bf16.msra.mxu0 0
        %312 = vmatprep.subr.bf16.mxu0 0
        %313 = vmatpush1.bf16.msra.mxu0 0
        %314 = vmatprep.subr.bf16.mxu0 0
        %315 = vmatpush1.bf16.msra.mxu0 0
        %316 = vmatprep.mubr.bf16.mxu0 0
        %317 = vmatmul.mubr.bf16.gmra.mrb[0].mxu0 %v234
        %v318 = vpop.f32.mrb[0].mxu0
        %v319 = vadd.f32 0.0, %v318
        %v320 = vpop.f32.mrb[0].mxu0
        %v321 = vpop.f32.mrb[0].mxu0
        %v322 = vadd.f32 0.0, %v321
        %v323 = vpop.f32.mrb[0].mxu0
        %324 = vdwg.mxu0
        %v325 = vadd.f32 %v210, %v319
        %v326 = vadd.f32 %v211, %v322
        %327 = vst [vmem:[#allocation2] sm:$0xff] %v325
        %328 = vst [vmem:[#allocation2 + $0x8] sm:$0xff] %v326
        // Predicated region
        $region41: #{discriminator_forward.4} parent=27 // pred_check
          %p329 = pneg %p204
        $region42: #{discriminator_forward.4} parent=27 // pred_check_branch
          %331 = sbr.rel (%p329) target = $region44
        $region43: #{discriminator_forward.4} parent=27 // pred_region
          %v332 = vld [vmem:[#allocation2] sm:$0xff]
          %v333 = vld [vmem:[#allocation2 + $0x8] sm:$0xff]
          %vm334 = vcmp.gt.f32.partialorder %v332, 0.0
          %vm335 = vcmp.gt.f32.partialorder %v333, 0.0
          %v336 = vmul.f32 %v332, 0.2
          %v337 = vmul.f32 %v333, 0.2
          %v338 = vsel %vm334, %v332, %v336
          %v339 = vsel %vm335, %v333, %v337
          %v340 = vpack.c.bf16 %v339, %v338
          %v342 = vunpack.c.l.b16 %v340
          %v343 = vunpack.c.h.b16 %v340
          %v344 = vpack.c.b16 %v342, %v342
          %v345 = vpack.c.b16 %v343, %v343
          %348 = vst [vmem:[%s199] sm:$0xf] %v344
          %349 = vst [vmem:[%s199 + $0x4] sm:$0xf] %v345
        $region44: #{discriminator_forward.4} parent=27 // pred_fallthru
          _
        %s350 = sand.u32 %s94, 1
        %s351 = scalar_lea.sflag [#allocation5], %s350
        %s352 = sand.u32 %s94, 1
        %s353 = smul.addr %s352, 8
        %s354 = scalar_lea.vmem [#allocation8], %s353
        // Predicated region
        $region45: #{discriminator_forward.4} parent=27 // pred_check
          %p355 = pneg %p104
        $region46: #{discriminator_forward.4} parent=27 // pred_check_branch
          %357 = sbr.rel (%p355) target = $region48
        $region47: #{discriminator_forward.4} parent=27 // pred_region
          %s358 = smul.u32 2, %s24
          %s360 = ssub.s32 128, 128
          %361 = vsyncadd %s351, %s360
          %s362 = smul.addr %s358, 64
          %s363 = scalar_lea.hbm %s2, %s362
          %s364 = sshll.u32 %s354, 4
          %s365 = int_to_ptr.vmem [resolvable:$true] %s364
          %370 = dma.vmem_to_hbm [thread:$0]  %s365, 128, %s363, %s351, 64, 64, 4
        $region48: #{discriminator_forward.4} parent=27 // pred_fallthru
          _
      $region28: #{discriminator_forward.4} parent=5 // pred_fallthru
        _
      %p371 = scmp.le.s32.totalorder 2, %s15
      // Predicated region
      $region49: #{discriminator_forward.4} parent=5 // pred_check
        %p372 = pneg %p371
      $region50: #{discriminator_forward.4} parent=5 // pred_check_branch
        %374 = sbr.rel (%p372) target = $region52
      $region51: #{discriminator_forward.4} parent=5 // pred_region
        %s375 = ssub.s32 %s15, 2
        // Predicated region
        $region53: #{discriminator_forward.4} parent=51 // pred_check
          %p376 = pneg %p110
        $region54: #{discriminator_forward.4} parent=51 // pred_check_branch
          %378 = sbr.rel (%p376) target = $region56
        $region55: #{discriminator_forward.4} parent=51 // pred_region
          %s379 = sand.u32 %s95, 1
          %s380 = scalar_lea.sflag [#allocation5], %s379
          %s381 = sand.u32 %s95, 1
          %s382 = smul.addr %s381, 8
          %s383 = scalar_lea.vmem [#allocation8], %s382
          %384 = dma.done %s380, 128
        $region56: #{discriminator_forward.4} parent=51 // pred_fallthru
          _
      $region52: #{discriminator_forward.4} parent=5 // pred_fallthru
        _
    $region6: #{discriminator_forward.4} parent=1 // loop_footer
      %s19 = sadd.s32 1, %s15
    $region7: #{discriminator_forward.4} parent=1 // loop_footer_branch
      %14 = sbr.rel target = $region3
    $region8: #{discriminator_forward.4} parent=1 // loop_exit
      _
    %385 = vsyncpa [#allocation4], 1
    %s386 = scalar_lea.sflag [#allocation4], 1
    %387 = vsyncpa %s386, 1
    %388 = vsyncpa [#allocation7], 1
    %389 = vsyncpa [#allocation5], 1
    %s390 = scalar_lea.sflag [#allocation5], 1
    %391 = vsyncpa %s390, 1

// kernel: discriminator_forward.5
$region0: #{discriminator_forward.5}
  #allocation0 [shape = 'u32[]', space=smem, size = 0x4, offset = 0x4, fixed_abs, tag = 'smem constant byte address 0x4 - core index']
  #allocation1 [shape = 'u32[144,128]{1,0:T(1,128)}', space=vmem, size = 0x12000, scoped, tag = 'internal scratch']
  %s0 = inlined_call_operand.hbm [shape: bf16[8,256], index: 0, kind: input, shape index: {}]
  %s1 = inlined_call_operand.hbm [shape: bf16[256,512], index: 1, kind: input, shape index: {}]
  %s2 = inlined_call_operand.hbm [shape: f32[1,512], index: 2, kind: input, shape index: {}]
  %s3 = inlined_call_operand.hbm [shape: f32[512,128], index: 3, kind: input, shape index: {}]
  %s4 = inlined_call_operand.hbm [shape: f32[1,128], index: 4, kind: input, shape index: {}]
  %s5 = inlined_call_operand.hbm [shape: f32[128,128], index: 5, kind: input, shape index: {}]
  %s6 = inlined_call_operand.hbm [shape: f32[1,128], index: 6, kind: input, shape index: {}]
  %s7 = inlined_call_operand.hbm [shape: f32[128,128], index: 7, kind: input, shape index: {}]
  %s8 = inlined_call_operand.hbm [shape: f32[1,128], index: 8, kind: input, shape index: {}]
  %s9 = inlined_call_operand.hbm [shape: f32[8,512], index: 9, kind: output, shape index: {0}]
  %s10 = inlined_call_operand.hbm [shape: f32[8,128], index: 10, kind: output, shape index: {1}]
  %11 = xla_tuple %s9, %s10
  %s12 = sld [smem:[#allocation0]]
  $region90: #{discriminator_forward.5} parent=0
    _
  %s14 = ssub.s32 1, %s12
  %s15 = scalar_select 0, %s14, %s12
  $region1: #{discriminator_forward.5} parent=0
    #allocation2 [shape = 'u8[4096]{0}', space=vmem, size = 0x1000, scoped, tag = 'input window, operand 0, single buffered']
    #allocation3 [shape = 's32[1]{0}', space=sflag, size = 0x4, scoped, tag = 'scoped memory for discriminator_forward.5']
    #allocation4 [shape = 's32[1]{0}', space=sflag, size = 0x4, scoped, tag = 'scoped memory for discriminator_forward.5']
    #allocation5 [shape = 'u8[262144]{0}', space=vmem, size = 0x40000, scoped, tag = 'input window, operand 1, single buffered']
    #allocation6 [shape = 's32[1]{0}', space=sflag, size = 0x4, scoped, tag = 'scoped memory for discriminator_forward.5']
    #allocation7 [shape = 'u8[2048]{0}', space=vmem, size = 0x800, scoped, tag = 'input window, operand 2, single buffered']
    #allocation8 [shape = 'u8[262144]{0}', space=vmem, size = 0x40000, scoped, tag = 'input window, operand 3, single buffered']
    #allocation9 [shape = 's32[1]{0}', space=sflag, size = 0x4, scoped, tag = 'scoped memory for discriminator_forward.5']
    #allocation10 [shape = 'u8[512]{0}', space=vmem, size = 0x400, scoped, tag = 'input window, operand 4, single buffered']
    #allocation11 [shape = 'u8[65536]{0}', space=vmem, size = 0x10000, scoped, tag = 'input window, operand 5, single buffered']
    #allocation12 [shape = 's32[1]{0}', space=sflag, size = 0x4, scoped, tag = 'scoped memory for discriminator_forward.5']
    #allocation13 [shape = 'u8[512]{0}', space=vmem, size = 0x400, scoped, tag = 'input window, operand 6, single buffered']
    #allocation14 [shape = 'u8[65536]{0}', space=vmem, size = 0x10000, scoped, tag = 'input window, operand 7, single buffered']
    #allocation15 [shape = 's32[1]{0}', space=sflag, size = 0x4, scoped, tag = 'scoped memory for discriminator_forward.5']
    #allocation16 [shape = 'u8[512]{0}', space=vmem, size = 0x400, scoped, tag = 'input window, operand 8, single buffered']
    #allocation17 [shape = 'u8[16384]{0}', space=vmem, size = 0x4000, scoped, tag = 'output window, operand 0, single buffered']
    #allocation18 [shape = 'u8[4096]{0}', space=vmem, size = 0x1000, scoped, tag = 'output window, operand 1, single buffered']
    #allocation19 [shape = 's32[1]{0}', space=sflag, size = 0x4, scoped, tag = 'scoped memory for discriminator_forward.5']
    %16 = vsyncpa [#allocation3], 0
    %17 = vsyncpa [#allocation6], 0
    %18 = vsyncpa [#allocation9], 0
    %19 = vsyncpa [#allocation12], 0
    %20 = vsyncpa [#allocation15], 0
    %21 = vsyncpa [#allocation4], 0
    %22 = vsyncpa [#allocation19], 0
    // Predicated region
    $region2: #{discriminator_forward.5} parent=1 // pred_check
      _
    $region3: #{discriminator_forward.5} parent=1 // pred_check_branch
      %24 = sbr.rel (0) target = $region5
    $region4: #{discriminator_forward.5} parent=1 // pred_region
      %s26 = ssub.s32 128, 128
      %27 = vsyncadd [#allocation3], %s26
      %s29 = sshll.u32 [#allocation2], 4
      %s30 = int_to_ptr.vmem [resolvable:$true] %s29
      %32 = dma.hbm_to_vmem [thread:$0]  %s0, 128, %s30, [#allocation3]
    $region5: #{discriminator_forward.5} parent=1 // pred_fallthru
      _
    // Predicated region
    $region6: #{discriminator_forward.5} parent=1 // pred_check
      _
    $region7: #{discriminator_forward.5} parent=1 // pred_check_branch
      %34 = sbr.rel (0) target = $region9
    $region8: #{discriminator_forward.5} parent=1 // pred_region
      %s36 = ssub.s32 8192, 8192
      %37 = vsyncadd [#allocation6], %s36
      %s38 = sshll.u32 [#allocation5], 4
      %s39 = int_to_ptr.vmem [resolvable:$true] %s38
      %44 = dma.hbm_to_vmem [thread:$0]  %s1, 8192, %s39, [#allocation6], 256, 256, 16
    $region9: #{discriminator_forward.5} parent=1 // pred_fallthru
      _
    // Predicated region
    $region10: #{discriminator_forward.5} parent=1 // pred_check
      _
    $region11: #{discriminator_forward.5} parent=1 // pred_check_branch
      %46 = sbr.rel (0) target = $region13
    $region12: #{discriminator_forward.5} parent=1 // pred_region
      %s48 = ssub.s32 64, 64
      %49 = vsyncadd [#allocation6], %s48
      %s51 = sshll.u32 [#allocation7], 4
      %s52 = int_to_ptr.vmem [resolvable:$true] %s51
      %54 = dma.hbm_to_vmem [thread:$0]  %s2, 64, %s52, [#allocation6]
    $region13: #{discriminator_forward.5} parent=1 // pred_fallthru
      _
    // Predicated region
    $region14: #{discriminator_forward.5} parent=1 // pred_check
      _
    $region15: #{discriminator_forward.5} parent=1 // pred_check_branch
      %56 = sbr.rel (0) target = $region17
    $region16: #{discriminator_forward.5} parent=1 // pred_region
      %s58 = ssub.s32 8192, 8192
      %59 = vsyncadd [#allocation9], %s58
      %s60 = sshll.u32 [#allocation8], 4
      %s61 = int_to_ptr.vmem [resolvable:$true] %s60
      %66 = dma.hbm_to_vmem [thread:$0]  %s3, 8192, %s61, [#allocation9], 128, 128, 8
    $region17: #{discriminator_forward.5} parent=1 // pred_fallthru
      _
    // Predicated region
    $region18: #{discriminator_forward.5} parent=1 // pred_check
      _
    $region19: #{discriminator_forward.5} parent=1 // pred_check_branch
      %68 = sbr.rel (0) target = $region21
    $region20: #{discriminator_forward.5} parent=1 // pred_region
      %s70 = ssub.s32 16, 16
      %71 = vsyncadd [#allocation9], %s70
      %s73 = sshll.u32 [#allocation10], 4
      %s74 = int_to_ptr.vmem [resolvable:$true] %s73
      %76 = dma.hbm_to_vmem [thread:$0]  %s4, 16, %s74, [#allocation9]
    $region21: #{discriminator_forward.5} parent=1 // pred_fallthru
      _
    // Predicated region
    $region22: #{discriminator_forward.5} parent=1 // pred_check
      _
    $region23: #{discriminator_forward.5} parent=1 // pred_check_branch
      %78 = sbr.rel (0) target = $region25
    $region24: #{discriminator_forward.5} parent=1 // pred_region
      %s80 = ssub.s32 2048, 2048
      %81 = vsyncadd [#allocation12], %s80
      %s82 = sshll.u32 [#allocation11], 4
      %s83 = int_to_ptr.vmem [resolvable:$true] %s82
      %88 = dma.hbm_to_vmem [thread:$0]  %s5, 2048, %s83, [#allocation12], 128, 128, 8
    $region25: #{discriminator_forward.5} parent=1 // pred_fallthru
      _
    // Predicated region
    $region26: #{discriminator_forward.5} parent=1 // pred_check
      _
    $region27: #{discriminator_forward.5} parent=1 // pred_check_branch
      %90 = sbr.rel (0) target = $region29
    $region28: #{discriminator_forward.5} parent=1 // pred_region
      %s92 = ssub.s32 16, 16
      %93 = vsyncadd [#allocation12], %s92
      %s95 = sshll.u32 [#allocation13], 4
      %s96 = int_to_ptr.vmem [resolvable:$true] %s95
      %98 = dma.hbm_to_vmem [thread:$0]  %s6, 16, %s96, [#allocation12]
    $region29: #{discriminator_forward.5} parent=1 // pred_fallthru
      _
    // Predicated region
    $region30: #{discriminator_forward.5} parent=1 // pred_check
      _
    $region31: #{discriminator_forward.5} parent=1 // pred_check_branch
      %100 = sbr.rel (0) target = $region33
    $region32: #{discriminator_forward.5} parent=1 // pred_region
      %s102 = ssub.s32 2048, 2048
      %103 = vsyncadd [#allocation15], %s102
      %s104 = sshll.u32 [#allocation14], 4
      %s105 = int_to_ptr.vmem [resolvable:$true] %s104
      %110 = dma.hbm_to_vmem [thread:$0]  %s7, 2048, %s105, [#allocation15], 128, 128, 8
    $region33: #{discriminator_forward.5} parent=1 // pred_fallthru
      _
    // Predicated region
    $region34: #{discriminator_forward.5} parent=1 // pred_check
      _
    $region35: #{discriminator_forward.5} parent=1 // pred_check_branch
      %112 = sbr.rel (0) target = $region37
    $region36: #{discriminator_forward.5} parent=1 // pred_region
      %s114 = ssub.s32 16, 16
      %115 = vsyncadd [#allocation15], %s114
      %s117 = sshll.u32 [#allocation16], 4
      %s118 = int_to_ptr.vmem [resolvable:$true] %s117
      %120 = dma.hbm_to_vmem [thread:$0]  %s8, 16, %s118, [#allocation15]
    $region37: #{discriminator_forward.5} parent=1 // pred_fallthru
      _
    // Predicated region
    $region38: #{discriminator_forward.5} parent=1 // pred_check
      _
    $region39: #{discriminator_forward.5} parent=1 // pred_check_branch
      %122 = sbr.rel (0) target = $region41
    $region40: #{discriminator_forward.5} parent=1 // pred_region
      %123 = dma.done [#allocation3], 128
    $region41: #{discriminator_forward.5} parent=1 // pred_fallthru
      _
    // Predicated region
    $region42: #{discriminator_forward.5} parent=1 // pred_check
      _
    $region43: #{discriminator_forward.5} parent=1 // pred_check_branch
      %125 = sbr.rel (0) target = $region45
    $region44: #{discriminator_forward.5} parent=1 // pred_region
      %126 = dma.done [#allocation6], 8192
    $region45: #{discriminator_forward.5} parent=1 // pred_fallthru
      _
    // Predicated region
    $region46: #{discriminator_forward.5} parent=1 // pred_check
      _
    $region47: #{discriminator_forward.5} parent=1 // pred_check_branch
      %128 = sbr.rel (0) target = $region49
    $region48: #{discriminator_forward.5} parent=1 // pred_region
      %129 = dma.done [#allocation6], 64
    $region49: #{discriminator_forward.5} parent=1 // pred_fallthru
      _
    // Predicated region
    $region50: #{discriminator_forward.5} parent=1 // pred_check
      _
    $region51: #{discriminator_forward.5} parent=1 // pred_check_branch
      %131 = sbr.rel (0) target = $region53
    $region52: #{discriminator_forward.5} parent=1 // pred_region
      %132 = dma.done [#allocation9], 8192
    $region53: #{discriminator_forward.5} parent=1 // pred_fallthru
      _
    // Predicated region
    $region54: #{discriminator_forward.5} parent=1 // pred_check
      _
    $region55: #{discriminator_forward.5} parent=1 // pred_check_branch
      %134 = sbr.rel (0) target = $region57
    $region56: #{discriminator_forward.5} parent=1 // pred_region
      %135 = dma.done [#allocation9], 16
    $region57: #{discriminator_forward.5} parent=1 // pred_fallthru
      _
    // Predicated region
    $region58: #{discriminator_forward.5} parent=1 // pred_check
      _
    $region59: #{discriminator_forward.5} parent=1 // pred_check_branch
      %137 = sbr.rel (0) target = $region61
    $region60: #{discriminator_forward.5} parent=1 // pred_region
      %138 = dma.done [#allocation12], 2048
    $region61: #{discriminator_forward.5} parent=1 // pred_fallthru
      _
    // Predicated region
    $region62: #{discriminator_forward.5} parent=1 // pred_check
      _
    $region63: #{discriminator_forward.5} parent=1 // pred_check_branch
      %140 = sbr.rel (0) target = $region65
    $region64: #{discriminator_forward.5} parent=1 // pred_region
      %141 = dma.done [#allocation12], 16
    $region65: #{discriminator_forward.5} parent=1 // pred_fallthru
      _
    // Predicated region
    $region66: #{discriminator_forward.5} parent=1 // pred_check
      _
    $region67: #{discriminator_forward.5} parent=1 // pred_check_branch
      %143 = sbr.rel (0) target = $region69
    $region68: #{discriminator_forward.5} parent=1 // pred_region
      %144 = dma.done [#allocation15], 2048
    $region69: #{discriminator_forward.5} parent=1 // pred_fallthru
      _
    // Predicated region
    $region70: #{discriminator_forward.5} parent=1 // pred_check
      _
    $region71: #{discriminator_forward.5} parent=1 // pred_check_branch
      %146 = sbr.rel (0) target = $region73
    $region72: #{discriminator_forward.5} parent=1 // pred_region
      %147 = dma.done [#allocation15], 16
    $region73: #{discriminator_forward.5} parent=1 // pred_fallthru
      _
    %v148 = vld [vmem:[#allocation2] sm:$0xff]
    %v149 = vld [vmem:[#allocation5] sm:$0xff]
    %v150 = vld [vmem:[#allocation5 + $0x8] sm:$0xff]
    %v151 = vld [vmem:[#allocation5 + $0x10] sm:$0xff]
    %v152 = vld [vmem:[#allocation5 + $0x18] sm:$0xff]
    %v153 = vld [vmem:[#allocation5 + $0x20] sm:$0xff]
    %v154 = vld [vmem:[#allocation5 + $0x28] sm:$0xff]
    %v155 = vld [vmem:[#allocation5 + $0x30] sm:$0xff]
    %v156 = vld [vmem:[#allocation5 + $0x38] sm:$0xff]
    %v157 = vld [vmem:[#allocation5 + $0x40] sm:$0xff]
    %v158 = vld [vmem:[#allocation5 + $0x48] sm:$0xff]
    %v159 = vld [vmem:[#allocation5 + $0x50] sm:$0xff]
    %v160 = vld [vmem:[#allocation5 + $0x58] sm:$0xff]
    %v161 = vld [vmem:[#allocation5 + $0x60] sm:$0xff]
    %v162 = vld [vmem:[#allocation5 + $0x68] sm:$0xff]
    %v163 = vld [vmem:[#allocation5 + $0x70] sm:$0xff]
    %v164 = vld [vmem:[#allocation5 + $0x78] sm:$0xff]
    %v165 = vld [vmem:[#allocation5 + $0x80] sm:$0xff]
    %v166 = vld [vmem:[#allocation5 + $0x88] sm:$0xff]
    %v167 = vld [vmem:[#allocation5 + $0x90] sm:$0xff]
    %v168 = vld [vmem:[#allocation5 + $0x98] sm:$0xff]
    %v169 = vld [vmem:[#allocation5 + $0xa0] sm:$0xff]
    %v170 = vld [vmem:[#allocation5 + $0xa8] sm:$0xff]
    %v171 = vld [vmem:[#allocation5 + $0xb0] sm:$0xff]
    %v172 = vld [vmem:[#allocation5 + $0xb8] sm:$0xff]
    %v173 = vld [vmem:[#allocation5 + $0xc0] sm:$0xff]
    %v174 = vld [vmem:[#allocation5 + $0xc8] sm:$0xff]
    %v175 = vld [vmem:[#allocation5 + $0xd0] sm:$0xff]
    %v176 = vld [vmem:[#allocation5 + $0xd8] sm:$0xff]
    %v177 = vld [vmem:[#allocation5 + $0xe0] sm:$0xff]
    %v178 = vld [vmem:[#allocation5 + $0xe8] sm:$0xff]
    %v179 = vld [vmem:[#allocation5 + $0xf0] sm:$0xff]
    %v180 = vld [vmem:[#allocation5 + $0xf8] sm:$0xff]
    %v181 = vld [vmem:[#allocation5 + $0x100] sm:$0xff]
    %v182 = vld [vmem:[#allocation5 + $0x108] sm:$0xff]
    %v183 = vld [vmem:[#allocation5 + $0x110] sm:$0xff]
    %v184 = vld [vmem:[#allocation5 + $0x118] sm:$0xff]
    %v185 = vld [vmem:[#allocation5 + $0x120] sm:$0xff]
    %v186 = vld [vmem:[#allocation5 + $0x128] sm:$0xff]
    %v187 = vld [vmem:[#allocation5 + $0x130] sm:$0xff]
    %v188 = vld [vmem:[#allocation5 + $0x138] sm:$0xff]
    %v189 = vld [vmem:[#allocation5 + $0x140] sm:$0xff]
    %v190 = vld [vmem:[#allocation5 + $0x148] sm:$0xff]
    %v191 = vld [vmem:[#allocation5 + $0x150] sm:$0xff]
    %v192 = vld [vmem:[#allocation5 + $0x158] sm:$0xff]
    %v193 = vld [vmem:[#allocation5 + $0x160] sm:$0xff]
    %v194 = vld [vmem:[#allocation5 + $0x168] sm:$0xff]
    %v195 = vld [vmem:[#allocation5 + $0x170] sm:$0xff]
    %v196 = vld [vmem:[#allocation5 + $0x178] sm:$0xff]
    %v197 = vld [vmem:[#allocation5 + $0x180] sm:$0xff]
    %v198 = vld [vmem:[#allocation5 + $0x188] sm:$0xff]
    %v199 = vld [vmem:[#allocation5 + $0x190] sm:$0xff]
    %v200 = vld [vmem:[#allocation5 + $0x198] sm:$0xff]
    %v201 = vld [vmem:[#allocation5 + $0x1a0] sm:$0xff]
    %v202 = vld [vmem:[#allocation5 + $0x1a8] sm:$0xff]
    %v203 = vld [vmem:[#allocation5 + $0x1b0] sm:$0xff]
    %v204 = vld [vmem:[#allocation5 + $0x1b8] sm:$0xff]
    %v205 = vld [vmem:[#allocation5 + $0x1c0] sm:$0xff]
    %v206 = vld [vmem:[#allocation5 + $0x1c8] sm:$0xff]
    %v207 = vld [vmem:[#allocation5 + $0x1d0] sm:$0xff]
    %v208 = vld [vmem:[#allocation5 + $0x1d8] sm:$0xff]
    %v209 = vld [vmem:[#allocation5 + $0x1e0] sm:$0xff]
    %v210 = vld [vmem:[#allocation5 + $0x1e8] sm:$0xff]
    %v211 = vld [vmem:[#allocation5 + $0x1f0] sm:$0xff]
    %v212 = vld [vmem:[#allocation5 + $0x1f8] sm:$0xff]
    %v214 = vunpack.c.l.b16 %v148
    %v215 = vunpack.c.h.b16 %v148
    %v216 = vpack.c.b16 %v214, %v214
    %v217 = vpack.c.b16 %v215, %v215
    %v284 = vunpack.c.l.b16 %v149
    %v285 = vunpack.c.h.b16 %v149
    %v286 = vunpack.c.l.b16 %v150
    %v287 = vunpack.c.h.b16 %v150
    %v288 = vunpack.c.l.b16 %v151
    %v289 = vunpack.c.h.b16 %v151
    %v290 = vunpack.c.l.b16 %v152
    %v291 = vunpack.c.h.b16 %v152
    %v292 = vunpack.c.l.b16 %v153
    %v293 = vunpack.c.h.b16 %v153
    %v294 = vunpack.c.l.b16 %v154
    %v295 = vunpack.c.h.b16 %v154
    %v296 = vunpack.c.l.b16 %v155
    %v297 = vunpack.c.h.b16 %v155
    %v298 = vunpack.c.l.b16 %v156
    %v299 = vunpack.c.h.b16 %v156
    %v300 = vunpack.c.l.b16 %v157
    %v301 = vunpack.c.h.b16 %v157
    %v302 = vunpack.c.l.b16 %v158
    %v303 = vunpack.c.h.b16 %v158
    %v304 = vunpack.c.l.b16 %v159
    %v305 = vunpack.c.h.b16 %v159
    %v306 = vunpack.c.l.b16 %v160
    %v307 = vunpack.c.h.b16 %v160
    %v308 = vunpack.c.l.b16 %v161
    %v309 = vunpack.c.h.b16 %v161
    %v310 = vunpack.c.l.b16 %v162
    %v311 = vunpack.c.h.b16 %v162
    %v312 = vunpack.c.l.b16 %v163
    %v313 = vunpack.c.h.b16 %v163
    %v314 = vunpack.c.l.b16 %v164
    %v315 = vunpack.c.h.b16 %v164
    %v316 = vunpack.c.l.b16 %v165
    %v317 = vunpack.c.h.b16 %v165
    %v318 = vunpack.c.l.b16 %v166
    %v319 = vunpack.c.h.b16 %v166
    %v320 = vunpack.c.l.b16 %v167
    %v321 = vunpack.c.h.b16 %v167
    %v322 = vunpack.c.l.b16 %v168
    %v323 = vunpack.c.h.b16 %v168
    %v324 = vunpack.c.l.b16 %v169
    %v325 = vunpack.c.h.b16 %v169
    %v326 = vunpack.c.l.b16 %v170
    %v327 = vunpack.c.h.b16 %v170
    %v328 = vunpack.c.l.b16 %v171
    %v329 = vunpack.c.h.b16 %v171
    %v330 = vunpack.c.l.b16 %v172
    %v331 = vunpack.c.h.b16 %v172
    %v332 = vunpack.c.l.b16 %v173
    %v333 = vunpack.c.h.b16 %v173
    %v334 = vunpack.c.l.b16 %v174
    %v335 = vunpack.c.h.b16 %v174
    %v336 = vunpack.c.l.b16 %v175
    %v337 = vunpack.c.h.b16 %v175
    %v338 = vunpack.c.l.b16 %v176
    %v339 = vunpack.c.h.b16 %v176
    %v340 = vunpack.c.l.b16 %v177
    %v341 = vunpack.c.h.b16 %v177
    %v342 = vunpack.c.l.b16 %v178
    %v343 = vunpack.c.h.b16 %v178
    %v344 = vunpack.c.l.b16 %v179
    %v345 = vunpack.c.h.b16 %v179
    %v346 = vunpack.c.l.b16 %v180
    %v347 = vunpack.c.h.b16 %v180
    %v348 = vunpack.c.l.b16 %v181
    %v349 = vunpack.c.h.b16 %v181
    %v350 = vunpack.c.l.b16 %v182
    %v351 = vunpack.c.h.b16 %v182
    %v352 = vunpack.c.l.b16 %v183
    %v353 = vunpack.c.h.b16 %v183
    %v354 = vunpack.c.l.b16 %v184
    %v355 = vunpack.c.h.b16 %v184
    %v356 = vunpack.c.l.b16 %v185
    %v357 = vunpack.c.h.b16 %v185
    %v358 = vunpack.c.l.b16 %v186
    %v359 = vunpack.c.h.b16 %v186
    %v360 = vunpack.c.l.b16 %v187
    %v361 = vunpack.c.h.b16 %v187
    %v362 = vunpack.c.l.b16 %v188
    %v363 = vunpack.c.h.b16 %v188
    %v364 = vunpack.c.l.b16 %v189
    %v365 = vunpack.c.h.b16 %v189
    %v366 = vunpack.c.l.b16 %v190
    %v367 = vunpack.c.h.b16 %v190
    %v368 = vunpack.c.l.b16 %v191
    %v369 = vunpack.c.h.b16 %v191
    %v370 = vunpack.c.l.b16 %v192
    %v371 = vunpack.c.h.b16 %v192
    %v372 = vunpack.c.l.b16 %v193
    %v373 = vunpack.c.h.b16 %v193
    %v374 = vunpack.c.l.b16 %v194
    %v375 = vunpack.c.h.b16 %v194
    %v376 = vunpack.c.l.b16 %v195
    %v377 = vunpack.c.h.b16 %v195
    %v378 = vunpack.c.l.b16 %v196
    %v379 = vunpack.c.h.b16 %v196
    %v380 = vunpack.c.l.b16 %v197
    %v381 = vunpack.c.h.b16 %v197
    %v382 = vunpack.c.l.b16 %v198
    %v383 = vunpack.c.h.b16 %v198
    %v384 = vunpack.c.l.b16 %v199
    %v385 = vunpack.c.h.b16 %v199
    %v386 = vunpack.c.l.b16 %v200
    %v387 = vunpack.c.h.b16 %v200
    %v388 = vunpack.c.l.b16 %v201
    %v389 = vunpack.c.h.b16 %v201
    %v390 = vunpack.c.l.b16 %v202
    %v391 = vunpack.c.h.b16 %v202
    %v392 = vunpack.c.l.b16 %v203
    %v393 = vunpack.c.h.b16 %v203
    %v394 = vunpack.c.l.b16 %v204
    %v395 = vunpack.c.h.b16 %v204
    %v396 = vunpack.c.l.b16 %v205
    %v397 = vunpack.c.h.b16 %v205
    %v398 = vunpack.c.l.b16 %v206
    %v399 = vunpack.c.h.b16 %v206
    %v400 = vunpack.c.l.b16 %v207
    %v401 = vunpack.c.h.b16 %v207
    %v402 = vunpack.c.l.b16 %v208
    %v403 = vunpack.c.h.b16 %v208
    %v404 = vunpack.c.l.b16 %v209
    %v405 = vunpack.c.h.b16 %v209
    %v406 = vunpack.c.l.b16 %v210
    %v407 = vunpack.c.h.b16 %v210
    %v408 = vunpack.c.l.b16 %v211
    %v409 = vunpack.c.h.b16 %v211
    %v410 = vunpack.c.l.b16 %v212
    %v411 = vunpack.c.h.b16 %v212
    %v412 = vpack.c.b16 %v288, %v284
    %v413 = vpack.c.b16 %v289, %v285
    %v414 = vpack.c.b16 %v290, %v286
    %v415 = vpack.c.b16 %v291, %v287
    %v416 = vpack.c.b16 %v296, %v292
    %v417 = vpack.c.b16 %v297, %v293
    %v418 = vpack.c.b16 %v298, %v294
    %v419 = vpack.c.b16 %v299, %v295
    %v420 = vpack.c.b16 %v304, %v300
    %v421 = vpack.c.b16 %v305, %v301
    %v422 = vpack.c.b16 %v306, %v302
    %v423 = vpack.c.b16 %v307, %v303
    %v424 = vpack.c.b16 %v312, %v308
    %v425 = vpack.c.b16 %v313, %v309
    %v426 = vpack.c.b16 %v314, %v310
    %v427 = vpack.c.b16 %v315, %v311
    %v428 = vpack.c.b16 %v320, %v316
    %v429 = vpack.c.b16 %v321, %v317
    %v430 = vpack.c.b16 %v322, %v318
    %v431 = vpack.c.b16 %v323, %v319
    %v432 = vpack.c.b16 %v328, %v324
    %v433 = vpack.c.b16 %v329, %v325
    %v434 = vpack.c.b16 %v330, %v326
    %v435 = vpack.c.b16 %v331, %v327
    %v436 = vpack.c.b16 %v336, %v332
    %v437 = vpack.c.b16 %v337, %v333
    %v438 = vpack.c.b16 %v338, %v334
    %v439 = vpack.c.b16 %v339, %v335
    %v440 = vpack.c.b16 %v344, %v340
    %v441 = vpack.c.b16 %v345, %v341
    %v442 = vpack.c.b16 %v346, %v342
    %v443 = vpack.c.b16 %v347, %v343
    %v444 = vpack.c.b16 %v352, %v348
    %v445 = vpack.c.b16 %v353, %v349
    %v446 = vpack.c.b16 %v354, %v350
    %v447 = vpack.c.b16 %v355, %v351
    %v448 = vpack.c.b16 %v360, %v356
    %v449 = vpack.c.b16 %v361, %v357
    %v450 = vpack.c.b16 %v362, %v358
    %v451 = vpack.c.b16 %v363, %v359
    %v452 = vpack.c.b16 %v368, %v364
    %v453 = vpack.c.b16 %v369, %v365
    %v454 = vpack.c.b16 %v370, %v366
    %v455 = vpack.c.b16 %v371, %v367
    %v456 = vpack.c.b16 %v376, %v372
    %v457 = vpack.c.b16 %v377, %v373
    %v458 = vpack.c.b16 %v378, %v374
    %v459 = vpack.c.b16 %v379, %v375
    %v460 = vpack.c.b16 %v384, %v380
    %v461 = vpack.c.b16 %v385, %v381
    %v462 = vpack.c.b16 %v386, %v382
    %v463 = vpack.c.b16 %v387, %v383
    %v464 = vpack.c.b16 %v392, %v388
    %v465 = vpack.c.b16 %v393, %v389
    %v466 = vpack.c.b16 %v394, %v390
    %v467 = vpack.c.b16 %v395, %v391
    %v468 = vpack.c.b16 %v400, %v396
    %v469 = vpack.c.b16 %v401, %v397
    %v470 = vpack.c.b16 %v402, %v398
    %v471 = vpack.c.b16 %v403, %v399
    %v472 = vpack.c.b16 %v408, %v404
    %v473 = vpack.c.b16 %v409, %v405
    %v474 = vpack.c.b16 %v410, %v406
    %v475 = vpack.c.b16 %v411, %v407
    %540 = vmatprep.subr.bf16.mxu0 %v413
    %541 = vmatpush1.bf16.msra.mxu0 %v412
    %542 = vmatprep.subr.bf16.mxu0 %v417
    %543 = vmatpush1.bf16.msra.mxu0 %v416
    %544 = vmatprep.subr.bf16.mxu0 %v421
    %545 = vmatpush1.bf16.msra.mxu0 %v420
    %546 = vmatprep.subr.bf16.mxu0 %v425
    %547 = vmatpush1.bf16.msra.mxu0 %v424
    %548 = vmatprep.subr.bf16.mxu0 %v429
    %549 = vmatpush1.bf16.msra.mxu0 %v428
    %550 = vmatprep.subr.bf16.mxu0 %v433
    %551 = vmatpush1.bf16.msra.mxu0 %v432
    %552 = vmatprep.subr.bf16.mxu0 %v437
    %553 = vmatpush1.bf16.msra.mxu0 %v436
    %554 = vmatprep.subr.bf16.mxu0 %v441
    %555 = vmatpush1.bf16.msra.mxu0 %v440
    %556 = vmatprep.subr.bf16.mxu0 %v445
    %557 = vmatpush1.bf16.msra.mxu0 %v444
    %558 = vmatprep.subr.bf16.mxu0 %v449
    %559 = vmatpush1.bf16.msra.mxu0 %v448
    %560 = vmatprep.subr.bf16.mxu0 %v453
    %561 = vmatpush1.bf16.msra.mxu0 %v452
    %562 = vmatprep.subr.bf16.mxu0 %v457
    %563 = vmatpush1.bf16.msra.mxu0 %v456
    %564 = vmatprep.subr.bf16.mxu0 %v461
    %565 = vmatpush1.bf16.msra.mxu0 %v460
    %566 = vmatprep.subr.bf16.mxu0 %v465
    %567 = vmatpush1.bf16.msra.mxu0 %v464
    %568 = vmatprep.subr.bf16.mxu0 %v469
    %569 = vmatpush1.bf16.msra.mxu0 %v468
    %570 = vmatprep.subr.bf16.mxu0 %v473
    %571 = vmatpush1.bf16.msra.mxu0 %v472
    %572 = vmatprep.mubr.bf16.mxu0 %v217
    %573 = vmatmul.mubr.bf16.gmra.mrb[0].mxu0 %v216
    %v574 = vpop.f32.mrb[0].mxu0
    %v575 = vadd.f32 0.0, %v574
    %v576 = vpop.f32.mrb[0].mxu0
    %v577 = vadd.f32 0.0, %v576
    %v578 = vpop.f32.mrb[0].mxu0
    %v579 = vpop.f32.mrb[0].mxu0
    %580 = vdwg.mxu0
    %581 = vmatprep.subr.bf16.mxu0 %v415
    %582 = vmatpush1.bf16.msra.mxu0 %v414
    %583 = vmatprep.subr.bf16.mxu0 %v419
    %584 = vmatpush1.bf16.msra.mxu0 %v418
    %585 = vmatprep.subr.bf16.mxu0 %v423
    %586 = vmatpush1.bf16.msra.mxu0 %v422
    %587 = vmatprep.subr.bf16.mxu0 %v427
    %588 = vmatpush1.bf16.msra.mxu0 %v426
    %589 = vmatprep.subr.bf16.mxu0 %v431
    %590 = vmatpush1.bf16.msra.mxu0 %v430
    %591 = vmatprep.subr.bf16.mxu0 %v435
    %592 = vmatpush1.bf16.msra.mxu0 %v434
    %593 = vmatprep.subr.bf16.mxu0 %v439
    %594 = vmatpush1.bf16.msra.mxu0 %v438
    %595 = vmatprep.subr.bf16.mxu0 %v443
    %596 = vmatpush1.bf16.msra.mxu0 %v442
    %597 = vmatprep.subr.bf16.mxu0 %v447
    %598 = vmatpush1.bf16.msra.mxu0 %v446
    %599 = vmatprep.subr.bf16.mxu0 %v451
    %600 = vmatpush1.bf16.msra.mxu0 %v450
    %601 = vmatprep.subr.bf16.mxu0 %v455
    %602 = vmatpush1.bf16.msra.mxu0 %v454
    %603 = vmatprep.subr.bf16.mxu0 %v459
    %604 = vmatpush1.bf16.msra.mxu0 %v458
    %605 = vmatprep.subr.bf16.mxu0 %v463
    %606 = vmatpush1.bf16.msra.mxu0 %v462
    %607 = vmatprep.subr.bf16.mxu0 %v467
    %608 = vmatpush1.bf16.msra.mxu0 %v466
    %609 = vmatprep.subr.bf16.mxu0 %v471
    %610 = vmatpush1.bf16.msra.mxu0 %v470
    %611 = vmatprep.subr.bf16.mxu0 %v475
    %612 = vmatpush1.bf16.msra.mxu0 %v474
    %613 = vmatprep.mubr.bf16.mxu0 %v217
    %614 = vmatmul.mubr.bf16.gmra.mrb[0].mxu0 %v216
    %v615 = vpop.f32.mrb[0].mxu0
    %v616 = vadd.f32 0.0, %v615
    %v617 = vpop.f32.mrb[0].mxu0
    %v618 = vadd.f32 0.0, %v617
    %v619 = vpop.f32.mrb[0].mxu0
    %v620 = vpop.f32.mrb[0].mxu0
    %621 = vdwg.mxu0
    %vm622 = vcmp.gt.f32.partialorder %v575, 0.0
    %vm623 = vcmp.gt.f32.partialorder %v577, 0.0
    %vm624 = vcmp.gt.f32.partialorder %v616, 0.0
    %vm625 = vcmp.gt.f32.partialorder %v618, 0.0
    %v626 = vld [vmem:[#allocation7] sm:$0xf]
    %v628 = vlaneseq
    %v629 = vshrl.u32 %v628, 7
    %v630 = vsub.s32 0, %v629
    %v631 = vrot.slane %v626, %v630
    %v632 = vlaneseq
    %v633 = vshrl.u32 %v632, 7
    %v634 = vsub.s32 1, %v633
    %v635 = vrot.slane %v626, %v634
    %v636 = vlaneseq
    %v637 = vshrl.u32 %v636, 7
    %v638 = vsub.s32 2, %v637
    %v639 = vrot.slane %v626, %v638
    %v640 = vlaneseq
    %v641 = vshrl.u32 %v640, 7
    %v642 = vsub.s32 3, %v641
    %v643 = vrot.slane %v626, %v642
    %v648 = vmul.f32 %v631, %v575
    %v649 = vmul.f32 %v635, %v577
    %v650 = vmul.f32 %v639, %v616
    %v651 = vmul.f32 %v643, %v618
    %v652 = vsel %vm622, %v575, %v648
    %v653 = vsel %vm623, %v577, %v649
    %v654 = vsel %vm624, %v616, %v650
    %v655 = vsel %vm625, %v618, %v651
    %656 = vst [vmem:[#allocation17] sm:$0xff] %v652
    %657 = vst [vmem:[#allocation17 + $0x8] sm:$0xff] %v653
    %658 = vst [vmem:[#allocation17 + $0x10] sm:$0xff] %v654
    %659 = vst [vmem:[#allocation17 + $0x18] sm:$0xff] %v655
    %v660 = vld [vmem:[#allocation8] sm:$0xff]
    %v661 = vld [vmem:[#allocation8 + $0x8] sm:$0xff]
    %v662 = vld [vmem:[#allocation8 + $0x10] sm:$0xff]
    %v663 = vld [vmem:[#allocation8 + $0x18] sm:$0xff]
    %v664 = vld [vmem:[#allocation8 + $0x20] sm:$0xff]
    %v665 = vld [vmem:[#allocation8 + $0x28] sm:$0xff]
    %v666 = vld [vmem:[#allocation8 + $0x30] sm:$0xff]
    %v667 = vld [vmem:[#allocation8 + $0x38] sm:$0xff]
    %v668 = vld [vmem:[#allocation8 + $0x40] sm:$0xff]
    %v669 = vld [vmem:[#allocation8 + $0x48] sm:$0xff]
    %v670 = vld [vmem:[#allocation8 + $0x50] sm:$0xff]
    %v671 = vld [vmem:[#allocation8 + $0x58] sm:$0xff]
    %v672 = vld [vmem:[#allocation8 + $0x60] sm:$0xff]
    %v673 = vld [vmem:[#allocation8 + $0x68] sm:$0xff]
    %v674 = vld [vmem:[#allocation8 + $0x70] sm:$0xff]
    %v675 = vld [vmem:[#allocation8 + $0x78] sm:$0xff]
    %v676 = vld [vmem:[#allocation8 + $0x80] sm:$0xff]
    %v677 = vld [vmem:[#allocation8 + $0x88] sm:$0xff]
    %v678 = vld [vmem:[#allocation8 + $0x90] sm:$0xff]
    %v679 = vld [vmem:[#allocation8 + $0x98] sm:$0xff]
    %v680 = vld [vmem:[#allocation8 + $0xa0] sm:$0xff]
    %v681 = vld [vmem:[#allocation8 + $0xa8] sm:$0xff]
    %v682 = vld [vmem:[#allocation8 + $0xb0] sm:$0xff]
    %v683 = vld [vmem:[#allocation8 + $0xb8] sm:$0xff]
    %v684 = vld [vmem:[#allocation8 + $0xc0] sm:$0xff]
    %v685 = vld [vmem:[#allocation8 + $0xc8] sm:$0xff]
    %v686 = vld [vmem:[#allocation8 + $0xd0] sm:$0xff]
    %v687 = vld [vmem:[#allocation8 + $0xd8] sm:$0xff]
    %v688 = vld [vmem:[#allocation8 + $0xe0] sm:$0xff]
    %v689 = vld [vmem:[#allocation8 + $0xe8] sm:$0xff]
    %v690 = vld [vmem:[#allocation8 + $0xf0] sm:$0xff]
    %v691 = vld [vmem:[#allocation8 + $0xf8] sm:$0xff]
    %v692 = vld [vmem:[#allocation8 + $0x100] sm:$0xff]
    %v693 = vld [vmem:[#allocation8 + $0x108] sm:$0xff]
    %v694 = vld [vmem:[#allocation8 + $0x110] sm:$0xff]
    %v695 = vld [vmem:[#allocation8 + $0x118] sm:$0xff]
    %v696 = vld [vmem:[#allocation8 + $0x120] sm:$0xff]
    %v697 = vld [vmem:[#allocation8 + $0x128] sm:$0xff]
    %v698 = vld [vmem:[#allocation8 + $0x130] sm:$0xff]
    %v699 = vld [vmem:[#allocation8 + $0x138] sm:$0xff]
    %v700 = vld [vmem:[#allocation8 + $0x140] sm:$0xff]
    %v701 = vld [vmem:[#allocation8 + $0x148] sm:$0xff]
    %v702 = vld [vmem:[#allocation8 + $0x150] sm:$0xff]
    %v703 = vld [vmem:[#allocation8 + $0x158] sm:$0xff]
    %v704 = vld [vmem:[#allocation8 + $0x160] sm:$0xff]
    %v705 = vld [vmem:[#allocation8 + $0x168] sm:$0xff]
    %v706 = vld [vmem:[#allocation8 + $0x170] sm:$0xff]
    %v707 = vld [vmem:[#allocation8 + $0x178] sm:$0xff]
    %v708 = vld [vmem:[#allocation8 + $0x180] sm:$0xff]
    %v709 = vld [vmem:[#allocation8 + $0x188] sm:$0xff]
    %v710 = vld [vmem:[#allocation8 + $0x190] sm:$0xff]
    %v711 = vld [vmem:[#allocation8 + $0x198] sm:$0xff]
    %v712 = vld [vmem:[#allocation8 + $0x1a0] sm:$0xff]
    %v713 = vld [vmem:[#allocation8 + $0x1a8] sm:$0xff]
    %v714 = vld [vmem:[#allocation8 + $0x1b0] sm:$0xff]
    %v715 = vld [vmem:[#allocation8 + $0x1b8] sm:$0xff]
    %v716 = vld [vmem:[#allocation8 + $0x1c0] sm:$0xff]
    %v717 = vld [vmem:[#allocation8 + $0x1c8] sm:$0xff]
    %v718 = vld [vmem:[#allocation8 + $0x1d0] sm:$0xff]
    %v719 = vld [vmem:[#allocation8 + $0x1d8] sm:$0xff]
    %v720 = vld [vmem:[#allocation8 + $0x1e0] sm:$0xff]
    %v721 = vld [vmem:[#allocation8 + $0x1e8] sm:$0xff]
    %v722 = vld [vmem:[#allocation8 + $0x1f0] sm:$0xff]
    %v723 = vld [vmem:[#allocation8 + $0x1f8] sm:$0xff]
    %v724 = vld [vmem:[#allocation10] sm:$0x1]
    %v726 = vlaneseq
    %v727 = vshrl.u32 %v726, 7
    %v728 = vsub.s32 0, %v727
    %v729 = vrot.slane %v724, %v728
    %731 = vmatprep.subr.mxu0 0.0
    %732 = vmatpush1.msra.mxu0 %v660
    %733 = vmatprep.subr.mxu0 0.0
    %734 = vmatpush1.msra.mxu0 %v661
    %735 = vmatprep.subr.mxu0 0.0
    %736 = vmatpush1.msra.mxu0 %v662
    %737 = vmatprep.subr.mxu0 0.0
    %738 = vmatpush1.msra.mxu0 %v663
    %739 = vmatprep.subr.mxu0 0.0
    %740 = vmatpush1.msra.mxu0 %v664
    %741 = vmatprep.subr.mxu0 0.0
    %742 = vmatpush1.msra.mxu0 %v665
    %743 = vmatprep.subr.mxu0 0.0
    %744 = vmatpush1.msra.mxu0 %v666
    %745 = vmatprep.subr.mxu0 0.0
    %746 = vmatpush1.msra.mxu0 %v667
    %747 = vmatprep.subr.mxu0 0.0
    %748 = vmatpush1.msra.mxu0 %v668
    %749 = vmatprep.subr.mxu0 0.0
    %750 = vmatpush1.msra.mxu0 %v669
    %751 = vmatprep.subr.mxu0 0.0
    %752 = vmatpush1.msra.mxu0 %v670
    %753 = vmatprep.subr.mxu0 0.0
    %754 = vmatpush1.msra.mxu0 %v671
    %755 = vmatprep.subr.mxu0 0.0
    %756 = vmatpush1.msra.mxu0 %v672
    %757 = vmatprep.subr.mxu0 0.0
    %758 = vmatpush1.msra.mxu0 %v673
    %759 = vmatprep.subr.mxu0 0.0
    %760 = vmatpush1.msra.mxu0 %v674
    %761 = vmatprep.subr.mxu0 0.0
    %762 = vmatpush1.msra.mxu0 %v675
    %763 = vmatprep.subr.mxu0 0.0
    %764 = vmatpush1.msra.mxu0 %v676
    %765 = vmatprep.subr.mxu0 0.0
    %766 = vmatpush1.msra.mxu0 %v677
    %767 = vmatprep.subr.mxu0 0.0
    %768 = vmatpush1.msra.mxu0 %v678
    %769 = vmatprep.subr.mxu0 0.0
    %770 = vmatpush1.msra.mxu0 %v679
    %771 = vmatprep.subr.mxu0 0.0
    %772 = vmatpush1.msra.mxu0 %v680
    %773 = vmatprep.subr.mxu0 0.0
    %774 = vmatpush1.msra.mxu0 %v681
    %775 = vmatprep.subr.mxu0 0.0
    %776 = vmatpush1.msra.mxu0 %v682
    %777 = vmatprep.subr.mxu0 0.0
    %778 = vmatpush1.msra.mxu0 %v683
    %779 = vmatprep.subr.mxu0 0.0
    %780 = vmatpush1.msra.mxu0 %v684
    %781 = vmatprep.subr.mxu0 0.0
    %782 = vmatpush1.msra.mxu0 %v685
    %783 = vmatprep.subr.mxu0 0.0
    %784 = vmatpush1.msra.mxu0 %v686
    %785 = vmatprep.subr.mxu0 0.0
    %786 = vmatpush1.msra.mxu0 %v687
    %787 = vmatprep.subr.mxu0 0.0
    %788 = vmatpush1.msra.mxu0 %v688
    %789 = vmatprep.subr.mxu0 0.0
    %790 = vmatpush1.msra.mxu0 %v689
    %791 = vmatprep.subr.mxu0 0.0
    %792 = vmatpush1.msra.mxu0 %v690
    %793 = vmatprep.subr.mxu0 0.0
    %794 = vmatpush1.msra.mxu0 %v691
    %795 = vmatprep.mubr.f32.mxu0 %v653
    %796 = vmatmul.mubr.f32.gmra.mrb[0].mxu0 %v652
    %v797 = vpop.f32.mrb[0].mxu0
    %v798 = vadd.f32 %v729, %v797
    %v799 = vpop.f32.mrb[0].mxu0
    %800 = vdwg.mxu0
    %801 = vmatprep.subr.mxu0 0.0
    %802 = vmatpush1.msra.mxu0 %v692
    %803 = vmatprep.subr.mxu0 0.0
    %804 = vmatpush1.msra.mxu0 %v693
    %805 = vmatprep.subr.mxu0 0.0
    %806 = vmatpush1.msra.mxu0 %v694
    %807 = vmatprep.subr.mxu0 0.0
    %808 = vmatpush1.msra.mxu0 %v695
    %809 = vmatprep.subr.mxu0 0.0
    %810 = vmatpush1.msra.mxu0 %v696
    %811 = vmatprep.subr.mxu0 0.0
    %812 = vmatpush1.msra.mxu0 %v697
    %813 = vmatprep.subr.mxu0 0.0
    %814 = vmatpush1.msra.mxu0 %v698
    %815 = vmatprep.subr.mxu0 0.0
    %816 = vmatpush1.msra.mxu0 %v699
    %817 = vmatprep.subr.mxu0 0.0
    %818 = vmatpush1.msra.mxu0 %v700
    %819 = vmatprep.subr.mxu0 0.0
    %820 = vmatpush1.msra.mxu0 %v701
    %821 = vmatprep.subr.mxu0 0.0
    %822 = vmatpush1.msra.mxu0 %v702
    %823 = vmatprep.subr.mxu0 0.0
    %824 = vmatpush1.msra.mxu0 %v703
    %825 = vmatprep.subr.mxu0 0.0
    %826 = vmatpush1.msra.mxu0 %v704
    %827 = vmatprep.subr.mxu0 0.0
    %828 = vmatpush1.msra.mxu0 %v705
    %829 = vmatprep.subr.mxu0 0.0
    %830 = vmatpush1.msra.mxu0 %v706
    %831 = vmatprep.subr.mxu0 0.0
    %832 = vmatpush1.msra.mxu0 %v707
    %833 = vmatprep.subr.mxu0 0.0
    %834 = vmatpush1.msra.mxu0 %v708
    %835 = vmatprep.subr.mxu0 0.0
    %836 = vmatpush1.msra.mxu0 %v709
    %837 = vmatprep.subr.mxu0 0.0
    %838 = vmatpush1.msra.mxu0 %v710
    %839 = vmatprep.subr.mxu0 0.0
    %840 = vmatpush1.msra.mxu0 %v711
    %841 = vmatprep.subr.mxu0 0.0
    %842 = vmatpush1.msra.mxu0 %v712
    %843 = vmatprep.subr.mxu0 0.0
    %844 = vmatpush1.msra.mxu0 %v713
    %845 = vmatprep.subr.mxu0 0.0
    %846 = vmatpush1.msra.mxu0 %v714
    %847 = vmatprep.subr.mxu0 0.0
    %848 = vmatpush1.msra.mxu0 %v715
    %849 = vmatprep.subr.mxu0 0.0
    %850 = vmatpush1.msra.mxu0 %v716
    %851 = vmatprep.subr.mxu0 0.0
    %852 = vmatpush1.msra.mxu0 %v717
    %853 = vmatprep.subr.mxu0 0.0
    %854 = vmatpush1.msra.mxu0 %v718
    %855 = vmatprep.subr.mxu0 0.0
    %856 = vmatpush1.msra.mxu0 %v719
    %857 = vmatprep.subr.mxu0 0.0
    %858 = vmatpush1.msra.mxu0 %v720
    %859 = vmatprep.subr.mxu0 0.0
    %860 = vmatpush1.msra.mxu0 %v721
    %861 = vmatprep.subr.mxu0 0.0
    %862 = vmatpush1.msra.mxu0 %v722
    %863 = vmatprep.subr.mxu0 0.0
    %864 = vmatpush1.msra.mxu0 %v723
    %865 = vmatprep.mubr.f32.mxu0 %v655
    %866 = vmatmul.mubr.f32.gmra.mrb[0].mxu0 %v654
    %v867 = vpop.f32.mrb[0].mxu0
    %v868 = vadd.f32 %v798, %v867
    %v869 = vpop.f32.mrb[0].mxu0
    %870 = vdwg.mxu0
    %vm871 = vcmp.gt.f32.partialorder %v868, 0.0
    %v872 = vmul.f32 %v868, 0.01
    %v873 = vsel %vm871, %v868, %v872
    %v874 = vld [vmem:[#allocation11] sm:$0xff]
    %v875 = vld [vmem:[#allocation11 + $0x8] sm:$0xff]
    %v876 = vld [vmem:[#allocation11 + $0x10] sm:$0xff]
    %v877 = vld [vmem:[#allocation11 + $0x18] sm:$0xff]
    %v878 = vld [vmem:[#allocation11 + $0x20] sm:$0xff]
    %v879 = vld [vmem:[#allocation11 + $0x28] sm:$0xff]
    %v880 = vld [vmem:[#allocation11 + $0x30] sm:$0xff]
    %v881 = vld [vmem:[#allocation11 + $0x38] sm:$0xff]
    %v882 = vld [vmem:[#allocation11 + $0x40] sm:$0xff]
    %v883 = vld [vmem:[#allocation11 + $0x48] sm:$0xff]
    %v884 = vld [vmem:[#allocation11 + $0x50] sm:$0xff]
    %v885 = vld [vmem:[#allocation11 + $0x58] sm:$0xff]
    %v886 = vld [vmem:[#allocation11 + $0x60] sm:$0xff]
    %v887 = vld [vmem:[#allocation11 + $0x68] sm:$0xff]
    %v888 = vld [vmem:[#allocation11 + $0x70] sm:$0xff]
    %v889 = vld [vmem:[#allocation11 + $0x78] sm:$0xff]
    %v890 = vld [vmem:[#allocation13] sm:$0x1]
    %v892 = vlaneseq
    %v893 = vshrl.u32 %v892, 7
    %v894 = vsub.s32 0, %v893
    %v895 = vrot.slane %v890, %v894
    %897 = vmatprep.subr.mxu0 0.0
    %898 = vmatpush1.msra.mxu0 %v874
    %899 = vmatprep.subr.mxu0 0.0
    %900 = vmatpush1.msra.mxu0 %v875
    %901 = vmatprep.subr.mxu0 0.0
    %902 = vmatpush1.msra.mxu0 %v876
    %903 = vmatprep.subr.mxu0 0.0
    %904 = vmatpush1.msra.mxu0 %v877
    %905 = vmatprep.subr.mxu0 0.0
    %906 = vmatpush1.msra.mxu0 %v878
    %907 = vmatprep.subr.mxu0 0.0
    %908 = vmatpush1.msra.mxu0 %v879
    %909 = vmatprep.subr.mxu0 0.0
    %910 = vmatpush1.msra.mxu0 %v880
    %911 = vmatprep.subr.mxu0 0.0
    %912 = vmatpush1.msra.mxu0 %v881
    %913 = vmatprep.subr.mxu0 0.0
    %914 = vmatpush1.msra.mxu0 %v882
    %915 = vmatprep.subr.mxu0 0.0
    %916 = vmatpush1.msra.mxu0 %v883
    %917 = vmatprep.subr.mxu0 0.0
    %918 = vmatpush1.msra.mxu0 %v884
    %919 = vmatprep.subr.mxu0 0.0
    %920 = vmatpush1.msra.mxu0 %v885
    %921 = vmatprep.subr.mxu0 0.0
    %922 = vmatpush1.msra.mxu0 %v886
    %923 = vmatprep.subr.mxu0 0.0
    %924 = vmatpush1.msra.mxu0 %v887
    %925 = vmatprep.subr.mxu0 0.0
    %926 = vmatpush1.msra.mxu0 %v888
    %927 = vmatprep.subr.mxu0 0.0
    %928 = vmatpush1.msra.mxu0 %v889
    %929 = vmatprep.subr.mxu0 0.0
    %930 = vmatpush1.msra.mxu0 0.0
    %931 = vmatprep.subr.mxu0 0.0
    %932 = vmatpush1.msra.mxu0 0.0
    %933 = vmatprep.subr.mxu0 0.0
    %934 = vmatpush1.msra.mxu0 0.0
    %935 = vmatprep.subr.mxu0 0.0
    %936 = vmatpush1.msra.mxu0 0.0
    %937 = vmatprep.subr.mxu0 0.0
    %938 = vmatpush1.msra.mxu0 0.0
    %939 = vmatprep.subr.mxu0 0.0
    %940 = vmatpush1.msra.mxu0 0.0
    %941 = vmatprep.subr.mxu0 0.0
    %942 = vmatpush1.msra.mxu0 0.0
    %943 = vmatprep.subr.mxu0 0.0
    %944 = vmatpush1.msra.mxu0 0.0
    %945 = vmatprep.subr.mxu0 0.0
    %946 = vmatpush1.msra.mxu0 0.0
    %947 = vmatprep.subr.mxu0 0.0
    %948 = vmatpush1.msra.mxu0 0.0
    %949 = vmatprep.subr.mxu0 0.0
    %950 = vmatpush1.msra.mxu0 0.0
    %951 = vmatprep.subr.mxu0 0.0
    %952 = vmatpush1.msra.mxu0 0.0
    %953 = vmatprep.subr.mxu0 0.0
    %954 = vmatpush1.msra.mxu0 0.0
    %955 = vmatprep.subr.mxu0 0.0
    %956 = vmatpush1.msra.mxu0 0.0
    %957 = vmatprep.subr.mxu0 0.0
    %958 = vmatpush1.msra.mxu0 0.0
    %959 = vmatprep.subr.mxu0 0.0
    %960 = vmatpush1.msra.mxu0 0.0
    %961 = vmatprep.mubr.f32.mxu0 0.0
    %962 = vmatmul.mubr.f32.gmra.mrb[0].mxu0 %v873
    %v963 = vpop.f32.mrb[0].mxu0
    %v964 = vadd.f32 %v895, %v963
    %v965 = vpop.f32.mrb[0].mxu0
    %966 = vdwg.mxu0
    %vm967 = vcmp.gt.f32.partialorder %v964, 0.0
    %v968 = vmul.f32 %v964, 0.01
    %v969 = vsel %vm967, %v964, %v968
    %v970 = vld [vmem:[#allocation14] sm:$0xff]
    %v971 = vld [vmem:[#allocation14 + $0x8] sm:$0xff]
    %v972 = vld [vmem:[#allocation14 + $0x10] sm:$0xff]
    %v973 = vld [vmem:[#allocation14 + $0x18] sm:$0xff]
    %v974 = vld [vmem:[#allocation14 + $0x20] sm:$0xff]
    %v975 = vld [vmem:[#allocation14 + $0x28] sm:$0xff]
    %v976 = vld [vmem:[#allocation14 + $0x30] sm:$0xff]
    %v977 = vld [vmem:[#allocation14 + $0x38] sm:$0xff]
    %v978 = vld [vmem:[#allocation14 + $0x40] sm:$0xff]
    %v979 = vld [vmem:[#allocation14 + $0x48] sm:$0xff]
    %v980 = vld [vmem:[#allocation14 + $0x50] sm:$0xff]
    %v981 = vld [vmem:[#allocation14 + $0x58] sm:$0xff]
    %v982 = vld [vmem:[#allocation14 + $0x60] sm:$0xff]
    %v983 = vld [vmem:[#allocation14 + $0x68] sm:$0xff]
    %v984 = vld [vmem:[#allocation14 + $0x70] sm:$0xff]
    %v985 = vld [vmem:[#allocation14 + $0x78] sm:$0xff]
    %v986 = vld [vmem:[#allocation16] sm:$0x1]
    %v988 = vlaneseq
    %v989 = vshrl.u32 %v988, 7
    %v990 = vsub.s32 0, %v989
    %v991 = vrot.slane %v986, %v990
    %993 = vmatprep.subr.mxu0 0.0
    %994 = vmatpush1.msra.mxu0 %v970
    %995 = vmatprep.subr.mxu0 0.0
    %996 = vmatpush1.msra.mxu0 %v971
    %997 = vmatprep.subr.mxu0 0.0
    %998 = vmatpush1.msra.mxu0 %v972
    %999 = vmatprep.subr.mxu0 0.0
    %1000 = vmatpush1.msra.mxu0 %v973
    %1001 = vmatprep.subr.mxu0 0.0
    %1002 = vmatpush1.msra.mxu0 %v974
    %1003 = vmatprep.subr.mxu0 0.0
    %1004 = vmatpush1.msra.mxu0 %v975
    %1005 = vmatprep.subr.mxu0 0.0
    %1006 = vmatpush1.msra.mxu0 %v976
    %1007 = vmatprep.subr.mxu0 0.0
    %1008 = vmatpush1.msra.mxu0 %v977
    %1009 = vmatprep.subr.mxu0 0.0
    %1010 = vmatpush1.msra.mxu0 %v978
    %1011 = vmatprep.subr.mxu0 0.0
    %1012 = vmatpush1.msra.mxu0 %v979
    %1013 = vmatprep.subr.mxu0 0.0
    %1014 = vmatpush1.msra.mxu0 %v980
    %1015 = vmatprep.subr.mxu0 0.0
    %1016 = vmatpush1.msra.mxu0 %v981
    %1017 = vmatprep.subr.mxu0 0.0
    %1018 = vmatpush1.msra.mxu0 %v982
    %1019 = vmatprep.subr.mxu0 0.0
    %1020 = vmatpush1.msra.mxu0 %v983
    %1021 = vmatprep.subr.mxu0 0.0
    %1022 = vmatpush1.msra.mxu0 %v984
    %1023 = vmatprep.subr.mxu0 0.0
    %1024 = vmatpush1.msra.mxu0 %v985
    %1025 = vmatprep.subr.mxu0 0.0
    %1026 = vmatpush1.msra.mxu0 0.0
    %1027 = vmatprep.subr.mxu0 0.0
    %1028 = vmatpush1.msra.mxu0 0.0
    %1029 = vmatprep.subr.mxu0 0.0
    %1030 = vmatpush1.msra.mxu0 0.0
    %1031 = vmatprep.subr.mxu0 0.0
    %1032 = vmatpush1.msra.mxu0 0.0
    %1033 = vmatprep.subr.mxu0 0.0
    %1034 = vmatpush1.msra.mxu0 0.0
    %1035 = vmatprep.subr.mxu0 0.0
    %1036 = vmatpush1.msra.mxu0 0.0
    %1037 = vmatprep.subr.mxu0 0.0
    %1038 = vmatpush1.msra.mxu0 0.0
    %1039 = vmatprep.subr.mxu0 0.0
    %1040 = vmatpush1.msra.mxu0 0.0
    %1041 = vmatprep.subr.mxu0 0.0
    %1042 = vmatpush1.msra.mxu0 0.0
    %1043 = vmatprep.subr.mxu0 0.0
    %1044 = vmatpush1.msra.mxu0 0.0
    %1045 = vmatprep.subr.mxu0 0.0
    %1046 = vmatpush1.msra.mxu0 0.0
    %1047 = vmatprep.subr.mxu0 0.0
    %1048 = vmatpush1.msra.mxu0 0.0
    %1049 = vmatprep.subr.mxu0 0.0
    %1050 = vmatpush1.msra.mxu0 0.0
    %1051 = vmatprep.subr.mxu0 0.0
    %1052 = vmatpush1.msra.mxu0 0.0
    %1053 = vmatprep.subr.mxu0 0.0
    %1054 = vmatpush1.msra.mxu0 0.0
    %1055 = vmatprep.subr.mxu0 0.0
    %1056 = vmatpush1.msra.mxu0 0.0
    %1057 = vmatprep.mubr.f32.mxu0 0.0
    %1058 = vmatmul.mubr.f32.gmra.mrb[0].mxu0 %v969
    %v1059 = vpop.f32.mrb[0].mxu0
    %v1060 = vadd.f32 %v991, %v1059
    %v1061 = vpop.f32.mrb[0].mxu0
    %1062 = vdwg.mxu0
    %1063 = vst [vmem:[#allocation18] sm:$0xff] %v1060
    // Predicated region
    $region74: #{discriminator_forward.5} parent=1 // pred_check
      _
    $region75: #{discriminator_forward.5} parent=1 // pred_check_branch
      %1065 = sbr.rel (0) target = $region77
    $region76: #{discriminator_forward.5} parent=1 // pred_region
      %s1067 = ssub.s32 512, 512
      %1068 = vsyncadd [#allocation4], %s1067
      %s1070 = sshll.u32 [#allocation17], 4
      %s1071 = int_to_ptr.vmem [resolvable:$true] %s1070
      %1073 = dma.vmem_to_hbm [thread:$0]  %s1071, 512, %s9, [#allocation4]
    $region77: #{discriminator_forward.5} parent=1 // pred_fallthru
      _
    // Predicated region
    $region78: #{discriminator_forward.5} parent=1 // pred_check
      _
    $region79: #{discriminator_forward.5} parent=1 // pred_check_branch
      %1075 = sbr.rel (0) target = $region81
    $region80: #{discriminator_forward.5} parent=1 // pred_region
      %s1077 = ssub.s32 128, 128
      %1078 = vsyncadd [#allocation19], %s1077
      %s1080 = sshll.u32 [#allocation18], 4
      %s1081 = int_to_ptr.vmem [resolvable:$true] %s1080
      %1083 = dma.vmem_to_hbm [thread:$0]  %s1081, 128, %s10, [#allocation19]
    $region81: #{discriminator_forward.5} parent=1 // pred_fallthru
      _
    // Predicated region
    $region82: #{discriminator_forward.5} parent=1 // pred_check
      _
    $region83: #{discriminator_forward.5} parent=1 // pred_check_branch
      %1085 = sbr.rel (0) target = $region85
    $region84: #{discriminator_forward.5} parent=1 // pred_region
      %1086 = dma.done [#allocation4], 512
    $region85: #{discriminator_forward.5} parent=1 // pred_fallthru
      _
    // Predicated region
    $region86: #{discriminator_forward.5} parent=1 // pred_check
      _
    $region87: #{discriminator_forward.5} parent=1 // pred_check_branch
      %1088 = sbr.rel (0) target = $region89
    $region88: #{discriminator_forward.5} parent=1 // pred_region
      %1089 = dma.done [#allocation19], 128
    $region89: #{discriminator_forward.5} parent=1 // pred_fallthru
      _
    %1090 = vsyncpa [#allocation3], 1
    %1091 = vsyncpa [#allocation6], 1
    %1092 = vsyncpa [#allocation9], 1
    %1093 = vsyncpa [#allocation12], 1
    %1094 = vsyncpa [#allocation15], 1
    %1095 = vsyncpa [#allocation4], 1
    %1096 = vsyncpa [#allocation19], 1

</llo_original>
